<compile_context>
chip_gen: v7x
topology: tpu7x:2x2x1
jax: 0.10.0
libtpu: 0.0.40
codegen_flags: <defaults>
</compile_context>

<pallas_src>
import functools

import jax
import jax.numpy as jnp
import numpy as np
from jax.experimental import pallas as pl
from jax.experimental.pallas import tpu as pltpu


def _attention_kernel(x_ref, wqkv_ref, wproj_ref, bproj_ref, o_ref, *,
                      batch, seq, num_heads, head_dim):
    # x_ref:     (B*N, C)   bf16 (pre-cast on host)
    # wqkv_ref:  (C, 3C)    bf16, scale already folded into the q columns
    # wproj_ref: (C, C)     bf16
    # bproj_ref: (1, C)     f32
    # o_ref:     (B*N, C)   x.dtype
    B, N, H, hd = batch, seq, num_heads, head_dim
    C = H * hd

    # --- Fused QKV projection: one MXU matmul, f32 accumulation. ---
    x = x_ref[...]                                               # (B*N, C) bf16
    qkv = jnp.dot(x, wqkv_ref[...],
                  preferred_element_type=jnp.float32)            # (B*N, 3C) f32
    qkv = qkv.astype(jnp.bfloat16).reshape(B, N, 3 * C)          # leading-dim split only

    # --- Per-head attention core (H, B tiny & static -> fully unrolled). ---
    # Column order of the fused 3C axis matches torch's reshape(B, N, 3, H, hd):
    # index = t*C + h*hd + d with t in {q, k, v}.
    head_outs = []
    for h in range(H):
        qh = qkv[:, :, h * hd:(h + 1) * hd]                      # (B, N, hd) bf16 (pre-scaled)
        kh = qkv[:, :, C + h * hd:C + (h + 1) * hd]              # (B, N, hd)
        vh = qkv[:, :, 2 * C + h * hd:2 * C + (h + 1) * hd]      # (B, N, hd)

        s = jnp.einsum('bnd,bmd->bnm', qh, kh,
                       preferred_element_type=jnp.float32)       # (B, N, N) f32
        m = jnp.max(s, axis=-1, keepdims=True)
        p = jnp.exp(s - m)                                       # f32
        l = jnp.sum(p, axis=-1, keepdims=True)                   # f32

        oh = jnp.einsum('bnm,bmd->bnd', p.astype(jnp.bfloat16), vh,
                        preferred_element_type=jnp.float32)      # (B, N, hd) f32
        # Normalize the f32 accumulator (hd lanes) instead of p (N lanes).
        head_outs.append(oh * pl.reciprocal(l, approx=True))

    # Heads back into the lane axis -> feature order h*hd + d, matching torch's
    # (attn @ v).transpose(1, 2).reshape(B, N, C).
    ho = jnp.concatenate(head_outs, axis=-1).astype(jnp.bfloat16)  # (B, N, C)
    ho = ho.reshape(B * N, C)                                      # merge leading dims

    # --- Fused output projection: one MXU matmul + f32 bias add. ---
    y = jnp.dot(ho, wproj_ref[...], preferred_element_type=jnp.float32)
    y = y + bproj_ref[...]
    o_ref[...] = y.astype(o_ref.dtype)


def attention_forward(x, w_qkv, w_proj, b_proj, *, num_heads, scale):
    B, N, C = x.shape
    hd = C // num_heads

    # Host-side prep (cheap XLA ops, done once outside the kernel):
    #  * fold the attention scale into the q columns of the fused QKV weight,
    #  * pre-cast weights and activations to bf16,
    #  * flatten (B, N) into the sublane axis for the fused matmuls.
    wqkv = w_qkv.at[:, :C].multiply(scale).astype(jnp.bfloat16)   # (C, 3C)
    wproj = w_proj.astype(jnp.bfloat16)                           # (C, C)
    bias = b_proj.reshape(1, C).astype(jnp.float32)
    x2d = x.reshape(B * N, C).astype(jnp.bfloat16)

    kernel = functools.partial(_attention_kernel, batch=B, seq=N,
                               num_heads=num_heads, head_dim=hd)

    out2d = pl.pallas_call(
        kernel,
        out_shape=jax.ShapeDtypeStruct((B * N, C), x.dtype),
        grid=(1,),                                # whole problem in a single grid step
        in_specs=[
            pl.BlockSpec((B * N, C), lambda i: (0, 0)),           # activations
            pl.BlockSpec((C, 3 * C), lambda i: (0, 0)),           # fused qkv weight (bf16, pre-scaled)
            pl.BlockSpec((C, C), lambda i: (0, 0)),               # proj weight (bf16)
            pl.BlockSpec((1, C), lambda i: (0, 0)),               # proj bias (f32)
        ],
        out_specs=pl.BlockSpec((B * N, C), lambda i: (0, 0)),
        compiler_params=pltpu.CompilerParams(
            dimension_semantics=("arbitrary",),
        ),
    )(x2d, wqkv, wproj, bias)
    return out2d.reshape(B, N, C)


def attention_reference(x, w_qkv, w_proj, b_proj, *, num_heads, scale):
    """Pure-JAX (f32) replica of the PyTorch forward, for validation."""
    B, N, C = x.shape
    hd = C // num_heads
    qkv = x @ w_qkv                                                  # (B, N, 3C)
    qkv = qkv.reshape(B, N, 3, num_heads, hd).transpose(2, 0, 3, 1, 4)
    q, k, v = qkv[0], qkv[1], qkv[2]                                 # (B, H, N, hd)
    attn = jnp.einsum('bhnd,bhmd->bhnm', q, k) * scale
    attn = jax.nn.softmax(attn, axis=-1)
    out = jnp.einsum('bhnm,bhmd->bhnd', attn, v)
    out = out.transpose(0, 2, 1, 3).reshape(B, N, C)
    return out @ w_proj + b_proj


if __name__ == "__main__":
    # Small shapes consistent with the module: dim=C=32, num_heads=8 -> head_dim=4.
    B, N, C = 2, 8, 32
    num_heads = 8
    head_dim = C // num_heads
    scale = head_dim ** (-0.5)

    key = jax.random.PRNGKey(0)
    kx, kqkv, kproj, kbias = jax.random.split(key, 4)

    x = jax.random.normal(kx, (B, N, C), dtype=jnp.float32)
    # Deterministic synthetic parameters (qkv has no bias: qkv_bias=False).
    w_qkv = jax.random.normal(kqkv, (C, 3 * C), dtype=jnp.float32) * 0.1
    w_proj = jax.random.normal(kproj, (C, C), dtype=jnp.float32) * 0.1
    b_proj = jax.random.normal(kbias, (1, C), dtype=jnp.float32) * 0.1

    out = attention_forward(x, w_qkv, w_proj, b_proj, num_heads=num_heads, scale=scale)
    out = jax.block_until_ready(out)

    ref = attention_reference(x, w_qkv, w_proj, b_proj, num_heads=num_heads, scale=scale)
    # bf16 MXU operands + approx reciprocal -> compare at mixed-precision tolerance.
    np.testing.assert_allclose(np.asarray(out), np.asarray(ref), rtol=2e-2, atol=2e-2)

    print("KERNEL_OK")
</pallas_src>

<mosaic_0001>
module attributes {stable_mosaic.version = 11 : i64} {
  func.func @_attention_kernel(%arg0: i32, %arg1: memref<16x32xbf16, #tpu.memory_space<vmem>>, %arg2: memref<32x96xbf16, #tpu.memory_space<vmem>>, %arg3: memref<32x32xbf16, #tpu.memory_space<vmem>>, %arg4: memref<1x32xf32, #tpu.memory_space<vmem>>, %arg5: memref<16x32xf32, #tpu.memory_space<vmem>>) attributes {dimension_semantics = [#tpu.dimension_semantics<arbitrary>], iteration_bounds = array<i64: 1>, scalar_prefetch = 0 : i64, scratch_operands = 0 : i64, tpu.core_type = #tpu.core_type<tc>, window_params = [{pipeline_mode = #tpu.pipeline_mode<synchronous>, transform_indices = @transform_0, window_bounds = array<i64: 16, 32>}, {pipeline_mode = #tpu.pipeline_mode<synchronous>, transform_indices = @transform_1, window_bounds = array<i64: 32, 96>}, {pipeline_mode = #tpu.pipeline_mode<synchronous>, transform_indices = @transform_2, window_bounds = array<i64: 32, 32>}, {pipeline_mode = #tpu.pipeline_mode<synchronous>, transform_indices = @transform_3, window_bounds = array<i64: 1, 32>}, {pipeline_mode = #tpu.pipeline_mode<synchronous>, transform_indices = @transform_4, window_bounds = array<i64: 16, 32>}]} {
    %c0 = arith.constant 0 : index
    %c0_0 = arith.constant 0 : index
    %0 = vector.load %arg1[%c0, %c0_0] : memref<16x32xbf16, #tpu.memory_space<vmem>>, vector<16x32xbf16>
    %c0_1 = arith.constant 0 : index
    %c0_2 = arith.constant 0 : index
    %1 = vector.load %arg2[%c0_1, %c0_2] : memref<32x96xbf16, #tpu.memory_space<vmem>>, vector<32x96xbf16>
    %cst = arith.constant dense<0.000000e+00> : vector<16x96xf32>
    %2 = tpu.matmul %0, %1, %cst {dimension_numbers = #tpu.dot_dimension_numbers<[1], [0], [0], [1], [0, 0, 1, 1], [], []>} : vector<16x32xbf16>, vector<32x96xbf16>, vector<16x96xf32> -> vector<16x96xf32>
    %3 = arith.truncf %2 : vector<16x96xf32> to vector<16x96xbf16>
    %4 = vector.shape_cast %3 : vector<16x96xbf16> to vector<2x8x96xbf16>
    %5 = vector.extract_strided_slice %4 {offsets = [0, 0, 0], sizes = [2, 8, 4], strides = [1, 1, 1]} : vector<2x8x96xbf16> to vector<2x8x4xbf16>
    %6 = vector.extract_strided_slice %4 {offsets = [0, 0, 32], sizes = [2, 8, 4], strides = [1, 1, 1]} : vector<2x8x96xbf16> to vector<2x8x4xbf16>
    %7 = vector.extract_strided_slice %4 {offsets = [0, 0, 64], sizes = [2, 8, 4], strides = [1, 1, 1]} : vector<2x8x96xbf16> to vector<2x8x4xbf16>
    "tpu.trace_start"() <{level = 10 : i32, message = "bnd,bmd->bnm"}> : () -> ()
    %cst_3 = arith.constant dense<0.000000e+00> : vector<2x8x8xf32>
    %8 = tpu.matmul %5, %6, %cst_3 {dimension_numbers = #tpu.dot_dimension_numbers<[2], [2], [1], [1], [0, 0, 0, 1, 1, 1], [0], [0]>} : vector<2x8x4xbf16>, vector<2x8x4xbf16>, vector<2x8x8xf32> -> vector<2x8x8xf32>
    "tpu.trace_stop"() : () -> ()
    %cst_4 = arith.constant dense<0xFF800000> : vector<2x8xf32>
    %9 = vector.multi_reduction <maximumf>, %8, %cst_4 [2] : vector<2x8x8xf32> to vector<2x8xf32>
    %10 = vector.shape_cast %9 : vector<2x8xf32> to vector<2x8x1xf32>
    %11 = vector.broadcast %10 : vector<2x8x1xf32> to vector<2x8x8xf32>
    %12 = arith.subf %8, %11 : vector<2x8x8xf32>
    %13 = math.exp %12 : vector<2x8x8xf32>
    %cst_5 = arith.constant dense<0.000000e+00> : vector<2x8xf32>
    %14 = vector.multi_reduction <add>, %13, %cst_5 [2] : vector<2x8x8xf32> to vector<2x8xf32>
    %15 = vector.shape_cast %14 : vector<2x8xf32> to vector<2x8x1xf32>
    %16 = arith.truncf %13 : vector<2x8x8xf32> to vector<2x8x8xbf16>
    "tpu.trace_start"() <{level = 10 : i32, message = "bnm,bmd->bnd"}> : () -> ()
    %cst_6 = arith.constant dense<0.000000e+00> : vector<2x8x4xf32>
    %17 = tpu.matmul %16, %7, %cst_6 {dimension_numbers = #tpu.dot_dimension_numbers<[2], [1], [1], [2], [0, 0, 0, 1, 1, 2], [0], [0]>} : vector<2x8x8xbf16>, vector<2x8x4xbf16>, vector<2x8x4xf32> -> vector<2x8x4xf32>
    "tpu.trace_stop"() : () -> ()
    %18 = tpu.reciprocal %15 {approx = true} : vector<2x8x1xf32> -> vector<2x8x1xf32>
    %19 = vector.broadcast %18 : vector<2x8x1xf32> to vector<2x8x4xf32>
    %20 = arith.mulf %17, %19 : vector<2x8x4xf32>
    %21 = vector.extract_strided_slice %4 {offsets = [0, 0, 4], sizes = [2, 8, 4], strides = [1, 1, 1]} : vector<2x8x96xbf16> to vector<2x8x4xbf16>
    %22 = vector.extract_strided_slice %4 {offsets = [0, 0, 36], sizes = [2, 8, 4], strides = [1, 1, 1]} : vector<2x8x96xbf16> to vector<2x8x4xbf16>
    %23 = vector.extract_strided_slice %4 {offsets = [0, 0, 68], sizes = [2, 8, 4], strides = [1, 1, 1]} : vector<2x8x96xbf16> to vector<2x8x4xbf16>
    "tpu.trace_start"() <{level = 10 : i32, message = "bnd,bmd->bnm"}> : () -> ()
    %cst_7 = arith.constant dense<0.000000e+00> : vector<2x8x8xf32>
    %24 = tpu.matmul %21, %22, %cst_7 {dimension_numbers = #tpu.dot_dimension_numbers<[2], [2], [1], [1], [0, 0, 0, 1, 1, 1], [0], [0]>} : vector<2x8x4xbf16>, vector<2x8x4xbf16>, vector<2x8x8xf32> -> vector<2x8x8xf32>
    "tpu.trace_stop"() : () -> ()
    %cst_8 = arith.constant dense<0xFF800000> : vector<2x8xf32>
    %25 = vector.multi_reduction <maximumf>, %24, %cst_8 [2] : vector<2x8x8xf32> to vector<2x8xf32>
    %26 = vector.shape_cast %25 : vector<2x8xf32> to vector<2x8x1xf32>
    %27 = vector.broadcast %26 : vector<2x8x1xf32> to vector<2x8x8xf32>
    %28 = arith.subf %24, %27 : vector<2x8x8xf32>
    %29 = math.exp %28 : vector<2x8x8xf32>
    %cst_9 = arith.constant dense<0.000000e+00> : vector<2x8xf32>
    %30 = vector.multi_reduction <add>, %29, %cst_9 [2] : vector<2x8x8xf32> to vector<2x8xf32>
    %31 = vector.shape_cast %30 : vector<2x8xf32> to vector<2x8x1xf32>
    %32 = arith.truncf %29 : vector<2x8x8xf32> to vector<2x8x8xbf16>
    "tpu.trace_start"() <{level = 10 : i32, message = "bnm,bmd->bnd"}> : () -> ()
    %cst_10 = arith.constant dense<0.000000e+00> : vector<2x8x4xf32>
    %33 = tpu.matmul %32, %23, %cst_10 {dimension_numbers = #tpu.dot_dimension_numbers<[2], [1], [1], [2], [0, 0, 0, 1, 1, 2], [0], [0]>} : vector<2x8x8xbf16>, vector<2x8x4xbf16>, vector<2x8x4xf32> -> vector<2x8x4xf32>
    "tpu.trace_stop"() : () -> ()
    %34 = tpu.reciprocal %31 {approx = true} : vector<2x8x1xf32> -> vector<2x8x1xf32>
    %35 = vector.broadcast %34 : vector<2x8x1xf32> to vector<2x8x4xf32>
    %36 = arith.mulf %33, %35 : vector<2x8x4xf32>
    %37 = vector.extract_strided_slice %4 {offsets = [0, 0, 8], sizes = [2, 8, 4], strides = [1, 1, 1]} : vector<2x8x96xbf16> to vector<2x8x4xbf16>
    %38 = vector.extract_strided_slice %4 {offsets = [0, 0, 40], sizes = [2, 8, 4], strides = [1, 1, 1]} : vector<2x8x96xbf16> to vector<2x8x4xbf16>
    %39 = vector.extract_strided_slice %4 {offsets = [0, 0, 72], sizes = [2, 8, 4], strides = [1, 1, 1]} : vector<2x8x96xbf16> to vector<2x8x4xbf16>
    "tpu.trace_start"() <{level = 10 : i32, message = "bnd,bmd->bnm"}> : () -> ()
    %cst_11 = arith.constant dense<0.000000e+00> : vector<2x8x8xf32>
    %40 = tpu.matmul %37, %38, %cst_11 {dimension_numbers = #tpu.dot_dimension_numbers<[2], [2], [1], [1], [0, 0, 0, 1, 1, 1], [0], [0]>} : vector<2x8x4xbf16>, vector<2x8x4xbf16>, vector<2x8x8xf32> -> vector<2x8x8xf32>
    "tpu.trace_stop"() : () -> ()
    %cst_12 = arith.constant dense<0xFF800000> : vector<2x8xf32>
    %41 = vector.multi_reduction <maximumf>, %40, %cst_12 [2] : vector<2x8x8xf32> to vector<2x8xf32>
    %42 = vector.shape_cast %41 : vector<2x8xf32> to vector<2x8x1xf32>
    %43 = vector.broadcast %42 : vector<2x8x1xf32> to vector<2x8x8xf32>
    %44 = arith.subf %40, %43 : vector<2x8x8xf32>
    %45 = math.exp %44 : vector<2x8x8xf32>
    %cst_13 = arith.constant dense<0.000000e+00> : vector<2x8xf32>
    %46 = vector.multi_reduction <add>, %45, %cst_13 [2] : vector<2x8x8xf32> to vector<2x8xf32>
    %47 = vector.shape_cast %46 : vector<2x8xf32> to vector<2x8x1xf32>
    %48 = arith.truncf %45 : vector<2x8x8xf32> to vector<2x8x8xbf16>
    "tpu.trace_start"() <{level = 10 : i32, message = "bnm,bmd->bnd"}> : () -> ()
    %cst_14 = arith.constant dense<0.000000e+00> : vector<2x8x4xf32>
    %49 = tpu.matmul %48, %39, %cst_14 {dimension_numbers = #tpu.dot_dimension_numbers<[2], [1], [1], [2], [0, 0, 0, 1, 1, 2], [0], [0]>} : vector<2x8x8xbf16>, vector<2x8x4xbf16>, vector<2x8x4xf32> -> vector<2x8x4xf32>
    "tpu.trace_stop"() : () -> ()
    %50 = tpu.reciprocal %47 {approx = true} : vector<2x8x1xf32> -> vector<2x8x1xf32>
    %51 = vector.broadcast %50 : vector<2x8x1xf32> to vector<2x8x4xf32>
    %52 = arith.mulf %49, %51 : vector<2x8x4xf32>
    %53 = vector.extract_strided_slice %4 {offsets = [0, 0, 12], sizes = [2, 8, 4], strides = [1, 1, 1]} : vector<2x8x96xbf16> to vector<2x8x4xbf16>
    %54 = vector.extract_strided_slice %4 {offsets = [0, 0, 44], sizes = [2, 8, 4], strides = [1, 1, 1]} : vector<2x8x96xbf16> to vector<2x8x4xbf16>
    %55 = vector.extract_strided_slice %4 {offsets = [0, 0, 76], sizes = [2, 8, 4], strides = [1, 1, 1]} : vector<2x8x96xbf16> to vector<2x8x4xbf16>
    "tpu.trace_start"() <{level = 10 : i32, message = "bnd,bmd->bnm"}> : () -> ()
    %cst_15 = arith.constant dense<0.000000e+00> : vector<2x8x8xf32>
    %56 = tpu.matmul %53, %54, %cst_15 {dimension_numbers = #tpu.dot_dimension_numbers<[2], [2], [1], [1], [0, 0, 0, 1, 1, 1], [0], [0]>} : vector<2x8x4xbf16>, vector<2x8x4xbf16>, vector<2x8x8xf32> -> vector<2x8x8xf32>
    "tpu.trace_stop"() : () -> ()
    %cst_16 = arith.constant dense<0xFF800000> : vector<2x8xf32>
    %57 = vector.multi_reduction <maximumf>, %56, %cst_16 [2] : vector<2x8x8xf32> to vector<2x8xf32>
    %58 = vector.shape_cast %57 : vector<2x8xf32> to vector<2x8x1xf32>
    %59 = vector.broadcast %58 : vector<2x8x1xf32> to vector<2x8x8xf32>
    %60 = arith.subf %56, %59 : vector<2x8x8xf32>
    %61 = math.exp %60 : vector<2x8x8xf32>
    %cst_17 = arith.constant dense<0.000000e+00> : vector<2x8xf32>
    %62 = vector.multi_reduction <add>, %61, %cst_17 [2] : vector<2x8x8xf32> to vector<2x8xf32>
    %63 = vector.shape_cast %62 : vector<2x8xf32> to vector<2x8x1xf32>
    %64 = arith.truncf %61 : vector<2x8x8xf32> to vector<2x8x8xbf16>
    "tpu.trace_start"() <{level = 10 : i32, message = "bnm,bmd->bnd"}> : () -> ()
    %cst_18 = arith.constant dense<0.000000e+00> : vector<2x8x4xf32>
    %65 = tpu.matmul %64, %55, %cst_18 {dimension_numbers = #tpu.dot_dimension_numbers<[2], [1], [1], [2], [0, 0, 0, 1, 1, 2], [0], [0]>} : vector<2x8x8xbf16>, vector<2x8x4xbf16>, vector<2x8x4xf32> -> vector<2x8x4xf32>
    "tpu.trace_stop"() : () -> ()
    %66 = tpu.reciprocal %63 {approx = true} : vector<2x8x1xf32> -> vector<2x8x1xf32>
    %67 = vector.broadcast %66 : vector<2x8x1xf32> to vector<2x8x4xf32>
    %68 = arith.mulf %65, %67 : vector<2x8x4xf32>
    %69 = vector.extract_strided_slice %4 {offsets = [0, 0, 16], sizes = [2, 8, 4], strides = [1, 1, 1]} : vector<2x8x96xbf16> to vector<2x8x4xbf16>
    %70 = vector.extract_strided_slice %4 {offsets = [0, 0, 48], sizes = [2, 8, 4], strides = [1, 1, 1]} : vector<2x8x96xbf16> to vector<2x8x4xbf16>
    %71 = vector.extract_strided_slice %4 {offsets = [0, 0, 80], sizes = [2, 8, 4], strides = [1, 1, 1]} : vector<2x8x96xbf16> to vector<2x8x4xbf16>
    "tpu.trace_start"() <{level = 10 : i32, message = "bnd,bmd->bnm"}> : () -> ()
    %cst_19 = arith.constant dense<0.000000e+00> : vector<2x8x8xf32>
    %72 = tpu.matmul %69, %70, %cst_19 {dimension_numbers = #tpu.dot_dimension_numbers<[2], [2], [1], [1], [0, 0, 0, 1, 1, 1], [0], [0]>} : vector<2x8x4xbf16>, vector<2x8x4xbf16>, vector<2x8x8xf32> -> vector<2x8x8xf32>
    "tpu.trace_stop"() : () -> ()
    %cst_20 = arith.constant dense<0xFF800000> : vector<2x8xf32>
    %73 = vector.multi_reduction <maximumf>, %72, %cst_20 [2] : vector<2x8x8xf32> to vector<2x8xf32>
    %74 = vector.shape_cast %73 : vector<2x8xf32> to vector<2x8x1xf32>
    %75 = vector.broadcast %74 : vector<2x8x1xf32> to vector<2x8x8xf32>
    %76 = arith.subf %72, %75 : vector<2x8x8xf32>
    %77 = math.exp %76 : vector<2x8x8xf32>
    %cst_21 = arith.constant dense<0.000000e+00> : vector<2x8xf32>
    %78 = vector.multi_reduction <add>, %77, %cst_21 [2] : vector<2x8x8xf32> to vector<2x8xf32>
    %79 = vector.shape_cast %78 : vector<2x8xf32> to vector<2x8x1xf32>
    %80 = arith.truncf %77 : vector<2x8x8xf32> to vector<2x8x8xbf16>
    "tpu.trace_start"() <{level = 10 : i32, message = "bnm,bmd->bnd"}> : () -> ()
    %cst_22 = arith.constant dense<0.000000e+00> : vector<2x8x4xf32>
    %81 = tpu.matmul %80, %71, %cst_22 {dimension_numbers = #tpu.dot_dimension_numbers<[2], [1], [1], [2], [0, 0, 0, 1, 1, 2], [0], [0]>} : vector<2x8x8xbf16>, vector<2x8x4xbf16>, vector<2x8x4xf32> -> vector<2x8x4xf32>
    "tpu.trace_stop"() : () -> ()
    %82 = tpu.reciprocal %79 {approx = true} : vector<2x8x1xf32> -> vector<2x8x1xf32>
    %83 = vector.broadcast %82 : vector<2x8x1xf32> to vector<2x8x4xf32>
    %84 = arith.mulf %81, %83 : vector<2x8x4xf32>
    %85 = vector.extract_strided_slice %4 {offsets = [0, 0, 20], sizes = [2, 8, 4], strides = [1, 1, 1]} : vector<2x8x96xbf16> to vector<2x8x4xbf16>
    %86 = vector.extract_strided_slice %4 {offsets = [0, 0, 52], sizes = [2, 8, 4], strides = [1, 1, 1]} : vector<2x8x96xbf16> to vector<2x8x4xbf16>
    %87 = vector.extract_strided_slice %4 {offsets = [0, 0, 84], sizes = [2, 8, 4], strides = [1, 1, 1]} : vector<2x8x96xbf16> to vector<2x8x4xbf16>
    "tpu.trace_start"() <{level = 10 : i32, message = "bnd,bmd->bnm"}> : () -> ()
    %cst_23 = arith.constant dense<0.000000e+00> : vector<2x8x8xf32>
    %88 = tpu.matmul %85, %86, %cst_23 {dimension_numbers = #tpu.dot_dimension_numbers<[2], [2], [1], [1], [0, 0, 0, 1, 1, 1], [0], [0]>} : vector<2x8x4xbf16>, vector<2x8x4xbf16>, vector<2x8x8xf32> -> vector<2x8x8xf32>
    "tpu.trace_stop"() : () -> ()
    %cst_24 = arith.constant dense<0xFF800000> : vector<2x8xf32>
    %89 = vector.multi_reduction <maximumf>, %88, %cst_24 [2] : vector<2x8x8xf32> to vector<2x8xf32>
    %90 = vector.shape_cast %89 : vector<2x8xf32> to vector<2x8x1xf32>
    %91 = vector.broadcast %90 : vector<2x8x1xf32> to vector<2x8x8xf32>
    %92 = arith.subf %88, %91 : vector<2x8x8xf32>
    %93 = math.exp %92 : vector<2x8x8xf32>
    %cst_25 = arith.constant dense<0.000000e+00> : vector<2x8xf32>
    %94 = vector.multi_reduction <add>, %93, %cst_25 [2] : vector<2x8x8xf32> to vector<2x8xf32>
    %95 = vector.shape_cast %94 : vector<2x8xf32> to vector<2x8x1xf32>
    %96 = arith.truncf %93 : vector<2x8x8xf32> to vector<2x8x8xbf16>
    "tpu.trace_start"() <{level = 10 : i32, message = "bnm,bmd->bnd"}> : () -> ()
    %cst_26 = arith.constant dense<0.000000e+00> : vector<2x8x4xf32>
    %97 = tpu.matmul %96, %87, %cst_26 {dimension_numbers = #tpu.dot_dimension_numbers<[2], [1], [1], [2], [0, 0, 0, 1, 1, 2], [0], [0]>} : vector<2x8x8xbf16>, vector<2x8x4xbf16>, vector<2x8x4xf32> -> vector<2x8x4xf32>
    "tpu.trace_stop"() : () -> ()
    %98 = tpu.reciprocal %95 {approx = true} : vector<2x8x1xf32> -> vector<2x8x1xf32>
    %99 = vector.broadcast %98 : vector<2x8x1xf32> to vector<2x8x4xf32>
    %100 = arith.mulf %97, %99 : vector<2x8x4xf32>
    %101 = vector.extract_strided_slice %4 {offsets = [0, 0, 24], sizes = [2, 8, 4], strides = [1, 1, 1]} : vector<2x8x96xbf16> to vector<2x8x4xbf16>
    %102 = vector.extract_strided_slice %4 {offsets = [0, 0, 56], sizes = [2, 8, 4], strides = [1, 1, 1]} : vector<2x8x96xbf16> to vector<2x8x4xbf16>
    %103 = vector.extract_strided_slice %4 {offsets = [0, 0, 88], sizes = [2, 8, 4], strides = [1, 1, 1]} : vector<2x8x96xbf16> to vector<2x8x4xbf16>
    "tpu.trace_start"() <{level = 10 : i32, message = "bnd,bmd->bnm"}> : () -> ()
    %cst_27 = arith.constant dense<0.000000e+00> : vector<2x8x8xf32>
    %104 = tpu.matmul %101, %102, %cst_27 {dimension_numbers = #tpu.dot_dimension_numbers<[2], [2], [1], [1], [0, 0, 0, 1, 1, 1], [0], [0]>} : vector<2x8x4xbf16>, vector<2x8x4xbf16>, vector<2x8x8xf32> -> vector<2x8x8xf32>
    "tpu.trace_stop"() : () -> ()
    %cst_28 = arith.constant dense<0xFF800000> : vector<2x8xf32>
    %105 = vector.multi_reduction <maximumf>, %104, %cst_28 [2] : vector<2x8x8xf32> to vector<2x8xf32>
    %106 = vector.shape_cast %105 : vector<2x8xf32> to vector<2x8x1xf32>
    %107 = vector.broadcast %106 : vector<2x8x1xf32> to vector<2x8x8xf32>
    %108 = arith.subf %104, %107 : vector<2x8x8xf32>
    %109 = math.exp %108 : vector<2x8x8xf32>
    %cst_29 = arith.constant dense<0.000000e+00> : vector<2x8xf32>
    %110 = vector.multi_reduction <add>, %109, %cst_29 [2] : vector<2x8x8xf32> to vector<2x8xf32>
    %111 = vector.shape_cast %110 : vector<2x8xf32> to vector<2x8x1xf32>
    %112 = arith.truncf %109 : vector<2x8x8xf32> to vector<2x8x8xbf16>
    "tpu.trace_start"() <{level = 10 : i32, message = "bnm,bmd->bnd"}> : () -> ()
    %cst_30 = arith.constant dense<0.000000e+00> : vector<2x8x4xf32>
    %113 = tpu.matmul %112, %103, %cst_30 {dimension_numbers = #tpu.dot_dimension_numbers<[2], [1], [1], [2], [0, 0, 0, 1, 1, 2], [0], [0]>} : vector<2x8x8xbf16>, vector<2x8x4xbf16>, vector<2x8x4xf32> -> vector<2x8x4xf32>
    "tpu.trace_stop"() : () -> ()
    %114 = tpu.reciprocal %111 {approx = true} : vector<2x8x1xf32> -> vector<2x8x1xf32>
    %115 = vector.broadcast %114 : vector<2x8x1xf32> to vector<2x8x4xf32>
    %116 = arith.mulf %113, %115 : vector<2x8x4xf32>
    %117 = vector.extract_strided_slice %4 {offsets = [0, 0, 28], sizes = [2, 8, 4], strides = [1, 1, 1]} : vector<2x8x96xbf16> to vector<2x8x4xbf16>
    %118 = vector.extract_strided_slice %4 {offsets = [0, 0, 60], sizes = [2, 8, 4], strides = [1, 1, 1]} : vector<2x8x96xbf16> to vector<2x8x4xbf16>
    %119 = vector.extract_strided_slice %4 {offsets = [0, 0, 92], sizes = [2, 8, 4], strides = [1, 1, 1]} : vector<2x8x96xbf16> to vector<2x8x4xbf16>
    "tpu.trace_start"() <{level = 10 : i32, message = "bnd,bmd->bnm"}> : () -> ()
    %cst_31 = arith.constant dense<0.000000e+00> : vector<2x8x8xf32>
    %120 = tpu.matmul %117, %118, %cst_31 {dimension_numbers = #tpu.dot_dimension_numbers<[2], [2], [1], [1], [0, 0, 0, 1, 1, 1], [0], [0]>} : vector<2x8x4xbf16>, vector<2x8x4xbf16>, vector<2x8x8xf32> -> vector<2x8x8xf32>
    "tpu.trace_stop"() : () -> ()
    %cst_32 = arith.constant dense<0xFF800000> : vector<2x8xf32>
    %121 = vector.multi_reduction <maximumf>, %120, %cst_32 [2] : vector<2x8x8xf32> to vector<2x8xf32>
    %122 = vector.shape_cast %121 : vector<2x8xf32> to vector<2x8x1xf32>
    %123 = vector.broadcast %122 : vector<2x8x1xf32> to vector<2x8x8xf32>
    %124 = arith.subf %120, %123 : vector<2x8x8xf32>
    %125 = math.exp %124 : vector<2x8x8xf32>
    %cst_33 = arith.constant dense<0.000000e+00> : vector<2x8xf32>
    %126 = vector.multi_reduction <add>, %125, %cst_33 [2] : vector<2x8x8xf32> to vector<2x8xf32>
    %127 = vector.shape_cast %126 : vector<2x8xf32> to vector<2x8x1xf32>
    %128 = arith.truncf %125 : vector<2x8x8xf32> to vector<2x8x8xbf16>
    "tpu.trace_start"() <{level = 10 : i32, message = "bnm,bmd->bnd"}> : () -> ()
    %cst_34 = arith.constant dense<0.000000e+00> : vector<2x8x4xf32>
    %129 = tpu.matmul %128, %119, %cst_34 {dimension_numbers = #tpu.dot_dimension_numbers<[2], [1], [1], [2], [0, 0, 0, 1, 1, 2], [0], [0]>} : vector<2x8x8xbf16>, vector<2x8x4xbf16>, vector<2x8x4xf32> -> vector<2x8x4xf32>
    "tpu.trace_stop"() : () -> ()
    %130 = tpu.reciprocal %127 {approx = true} : vector<2x8x1xf32> -> vector<2x8x1xf32>
    %131 = vector.broadcast %130 : vector<2x8x1xf32> to vector<2x8x4xf32>
    %132 = arith.mulf %129, %131 : vector<2x8x4xf32>
    %133 = tpu.concatenate %20, %36, %52, %68, %84, %100, %116, %132 in 2 : vector<2x8x4xf32>, vector<2x8x4xf32>, vector<2x8x4xf32>, vector<2x8x4xf32>, vector<2x8x4xf32>, vector<2x8x4xf32>, vector<2x8x4xf32>, vector<2x8x4xf32> -> vector<2x8x32xf32>
    %134 = arith.truncf %133 : vector<2x8x32xf32> to vector<2x8x32xbf16>
    %135 = vector.shape_cast %134 : vector<2x8x32xbf16> to vector<16x32xbf16>
    %c0_35 = arith.constant 0 : index
    %c0_36 = arith.constant 0 : index
    %136 = vector.load %arg3[%c0_35, %c0_36] : memref<32x32xbf16, #tpu.memory_space<vmem>>, vector<32x32xbf16>
    %cst_37 = arith.constant dense<0.000000e+00> : vector<16x32xf32>
    %137 = tpu.matmul %135, %136, %cst_37 {dimension_numbers = #tpu.dot_dimension_numbers<[1], [0], [0], [1], [0, 0, 1, 1], [], []>} : vector<16x32xbf16>, vector<32x32xbf16>, vector<16x32xf32> -> vector<16x32xf32>
    %c0_38 = arith.constant 0 : index
    %c0_39 = arith.constant 0 : index
    %138 = vector.load %arg4[%c0_38, %c0_39] : memref<1x32xf32, #tpu.memory_space<vmem>>, vector<1x32xf32>
    %139 = vector.broadcast %138 : vector<1x32xf32> to vector<16x32xf32>
    %140 = arith.addf %137, %139 : vector<16x32xf32>
    %c0_40 = arith.constant 0 : index
    %c0_41 = arith.constant 0 : index
    %141 = vector.load %arg5[%c0_40, %c0_41] : memref<16x32xf32, #tpu.memory_space<vmem>>, vector<16x32xf32>
    tpu.vector_store %arg5[%c0_40, %c0_41], %140 {strides = array<i32>} : memref<16x32xf32, #tpu.memory_space<vmem>>, vector<16x32xf32>,
    return
  }
  func.func @transform_0(%arg0: i32) -> (i32, i32) {
    %c0_i32 = arith.constant 0 : i32
    %c0_i32_0 = arith.constant 0 : i32
    %c0_i32_1 = arith.constant 0 : i32
    return %c0_i32, %c0_i32_0 : i32, i32
  }
  func.func @transform_1(%arg0: i32) -> (i32, i32) {
    %c0_i32 = arith.constant 0 : i32
    %c0_i32_0 = arith.constant 0 : i32
    %c0_i32_1 = arith.constant 0 : i32
    return %c0_i32, %c0_i32_0 : i32, i32
  }
  func.func @transform_2(%arg0: i32) -> (i32, i32) {
    %c0_i32 = arith.constant 0 : i32
    %c0_i32_0 = arith.constant 0 : i32
    %c0_i32_1 = arith.constant 0 : i32
    return %c0_i32, %c0_i32_0 : i32, i32
  }
  func.func @transform_3(%arg0: i32) -> (i32, i32) {
    %c0_i32 = arith.constant 0 : i32
    %c0_i32_0 = arith.constant 0 : i32
    %c0_i32_1 = arith.constant 0 : i32
    return %c0_i32, %c0_i32_0 : i32, i32
  }
  func.func @transform_4(%arg0: i32) -> (i32, i32) {
    %c0_i32 = arith.constant 0 : i32
    %c0_i32_0 = arith.constant 0 : i32
    %c0_i32_1 = arith.constant 0 : i32
    return %c0_i32, %c0_i32_0 : i32, i32
  }
}

</mosaic_0001>

<llo_original>
// kernel: tpu_custom_call.1
$region0: #{tpu_custom_call.1}
  #allocation0 [shape = 'u32[]', space=smem, size = 0x4, offset = 0x4, fixed_abs, tag = 'smem constant byte address 0x4 - core index']
  #allocation1 [shape = 'u32[144,128]{1,0:T(1,128)}', space=vmem, size = 0x12000, scoped, tag = 'internal scratch']
  %s0 = inlined_call_operand.hbm [shape: bf16[16,32], index: 0, kind: input, shape index: {}]
  %s1 = inlined_call_operand.hbm [shape: bf16[32,96], index: 1, kind: input, shape index: {}]
  %s2 = inlined_call_operand.hbm [shape: bf16[32,32], index: 2, kind: input, shape index: {}]
  %s3 = inlined_call_operand.vmem [shape: f32[1,32], index: 3, kind: input, shape index: {}]
  %s4 = inlined_call_operand.hbm [shape: f32[16,32], index: 4, kind: output, shape index: {}]
  %s5 = sld [smem:[#allocation0]]
  $region38: #{tpu_custom_call.1} parent=0
    _
  %s7 = ssub.s32 1, %s5
  %s8 = scalar_select 0, %s7, %s5
  $region1: #{tpu_custom_call.1} parent=0
    #allocation2 [shape = 'u8[4096]{0}', space=vmem, size = 0x1000, scoped, tag = 'input window, operand 0, single buffered']
    #allocation3 [shape = 's32[1]{0}', space=sflag, size = 0x4, scoped, tag = 'scoped memory for tpu_custom_call.1']
    #allocation4 [shape = 's32[1]{0}', space=sflag, size = 0x4, scoped, tag = 'scoped memory for tpu_custom_call.1']
    #allocation5 [shape = 'u8[8192]{0}', space=vmem, size = 0x2000, scoped, tag = 'input window, operand 1, single buffered']
    #allocation6 [shape = 's32[1]{0}', space=sflag, size = 0x4, scoped, tag = 'scoped memory for tpu_custom_call.1']
    #allocation7 [shape = 'u8[8192]{0}', space=vmem, size = 0x2000, scoped, tag = 'input window, operand 2, single buffered']
    #allocation8 [shape = 'u8[8192]{0}', space=vmem, size = 0x2000, scoped, tag = 'output window, operand 0, single buffered']
    %9 = vsyncpa [#allocation3], 0
    %10 = vsyncpa [#allocation6], 0
    %11 = vsyncpa [#allocation4], 0
    // Predicated region
    $region2: #{tpu_custom_call.1} parent=1 // pred_check
      _
    $region3: #{tpu_custom_call.1} parent=1 // pred_check_branch
      %13 = sbr.rel (0) target = $region5
    $region4: #{tpu_custom_call.1} parent=1 // pred_region
      %s15 = ssub.s32 128, 128
      %16 = vsyncadd [#allocation3], %s15
      %s17 = sshll.u32 [#allocation2], 4
      %s18 = int_to_ptr.vmem [resolvable:$true] %s17
      %23 = dma.hbm_to_vmem [thread:$0]  %s0, 128, %s18, [#allocation3], 64, 64, 4
    $region5: #{tpu_custom_call.1} parent=1 // pred_fallthru
      _
    // Predicated region
    $region6: #{tpu_custom_call.1} parent=1 // pred_check
      _
    $region7: #{tpu_custom_call.1} parent=1 // pred_check_branch
      %25 = sbr.rel (0) target = $region9
    $region8: #{tpu_custom_call.1} parent=1 // pred_region
      %s27 = ssub.s32 256, 256
      %28 = vsyncadd [#allocation6], %s27
      %s29 = sshll.u32 [#allocation5], 4
      %s30 = int_to_ptr.vmem [resolvable:$true] %s29
      %35 = dma.hbm_to_vmem [thread:$0]  %s1, 256, %s30, [#allocation6], 64, 64, 4
    $region9: #{tpu_custom_call.1} parent=1 // pred_fallthru
      _
    // Predicated region
    $region10: #{tpu_custom_call.1} parent=1 // pred_check
      _
    $region11: #{tpu_custom_call.1} parent=1 // pred_check_branch
      %37 = sbr.rel (0) target = $region13
    $region12: #{tpu_custom_call.1} parent=1 // pred_region
      %s39 = ssub.s32 256, 256
      %40 = vsyncadd [#allocation6], %s39
      %s41 = sshll.u32 [#allocation7], 4
      %s42 = int_to_ptr.vmem [resolvable:$true] %s41
      %47 = dma.hbm_to_vmem [thread:$0]  %s2, 256, %s42, [#allocation6], 64, 64, 4
    $region13: #{tpu_custom_call.1} parent=1 // pred_fallthru
      _
    // Predicated region
    $region14: #{tpu_custom_call.1} parent=1 // pred_check
      _
    $region15: #{tpu_custom_call.1} parent=1 // pred_check_branch
      %49 = sbr.rel (0) target = $region17
    $region16: #{tpu_custom_call.1} parent=1 // pred_region
      _
    $region17: #{tpu_custom_call.1} parent=1 // pred_fallthru
      _
    // Predicated region
    $region18: #{tpu_custom_call.1} parent=1 // pred_check
      _
    $region19: #{tpu_custom_call.1} parent=1 // pred_check_branch
      %51 = sbr.rel (0) target = $region21
    $region20: #{tpu_custom_call.1} parent=1 // pred_region
      %52 = dma.done [#allocation3], 128
    $region21: #{tpu_custom_call.1} parent=1 // pred_fallthru
      _
    // Predicated region
    $region22: #{tpu_custom_call.1} parent=1 // pred_check
      _
    $region23: #{tpu_custom_call.1} parent=1 // pred_check_branch
      %54 = sbr.rel (0) target = $region25
    $region24: #{tpu_custom_call.1} parent=1 // pred_region
      %55 = dma.done [#allocation6], 256
    $region25: #{tpu_custom_call.1} parent=1 // pred_fallthru
      _
    // Predicated region
    $region26: #{tpu_custom_call.1} parent=1 // pred_check
      _
    $region27: #{tpu_custom_call.1} parent=1 // pred_check_branch
      %57 = sbr.rel (0) target = $region29
    $region28: #{tpu_custom_call.1} parent=1 // pred_region
      %58 = dma.done [#allocation6], 256
    $region29: #{tpu_custom_call.1} parent=1 // pred_fallthru
      _
    %v60 = vld [vmem:[#allocation2] sm:$0xf]
    %v61 = vld [vmem:[#allocation2 + $0x4] sm:$0xf]
    %v62 = vld [vmem:[#allocation5] sm:$0xf]
    %v63 = vld [vmem:[#allocation5 + $0x4] sm:$0xf]
    %v64 = vld [vmem:[#allocation5 + $0x8] sm:$0xf]
    %v65 = vld [vmem:[#allocation5 + $0xc] sm:$0xf]
    %v68 = vunpack.c.l.b16 %v60
    %v69 = vunpack.c.l.b16 %v61
    %v70 = vpack.c.b16 %v69, %v68
    %v75 = vunpack.c.l.b16 %v62
    %v76 = vunpack.c.l.b16 %v63
    %v77 = vunpack.c.l.b16 %v64
    %v78 = vunpack.c.l.b16 %v65
    %v79 = vpack.c.b16 %v76, %v75
    %v80 = vpack.c.b16 %v78, %v77
    %vm83 = vcmask 261120
    %v85 = vsel %vm83, %v70, 0
    %87 = vmatprep.subr.bf16.mxu0 0
    %88 = vmatpush1.bf16.msra.mxu0 %v79
    %89 = vmatprep.subr.bf16.mxu0 0
    %90 = vmatpush1.bf16.msra.mxu0 %v80
    %91 = vmatprep.subr.bf16.mxu0 0
    %92 = vmatpush1.bf16.msra.mxu0 0
    %93 = vmatprep.subr.bf16.mxu0 0
    %94 = vmatpush1.bf16.msra.mxu0 0
    %95 = vmatprep.subr.bf16.mxu0 0
    %96 = vmatpush1.bf16.msra.mxu0 0
    %97 = vmatprep.subr.bf16.mxu0 0
    %98 = vmatpush1.bf16.msra.mxu0 0
    %99 = vmatprep.subr.bf16.mxu0 0
    %100 = vmatpush1.bf16.msra.mxu0 0
    %101 = vmatprep.subr.bf16.mxu0 0
    %102 = vmatpush1.bf16.msra.mxu0 0
    %103 = vmatprep.subr.bf16.mxu0 0
    %104 = vmatpush1.bf16.msra.mxu0 0
    %105 = vmatprep.subr.bf16.mxu0 0
    %106 = vmatpush1.bf16.msra.mxu0 0
    %107 = vmatprep.subr.bf16.mxu0 0
    %108 = vmatpush1.bf16.msra.mxu0 0
    %109 = vmatprep.subr.bf16.mxu0 0
    %110 = vmatpush1.bf16.msra.mxu0 0
    %111 = vmatprep.subr.bf16.mxu0 0
    %112 = vmatpush1.bf16.msra.mxu0 0
    %113 = vmatprep.subr.bf16.mxu0 0
    %114 = vmatpush1.bf16.msra.mxu0 0
    %115 = vmatprep.subr.bf16.mxu0 0
    %116 = vmatpush1.bf16.msra.mxu0 0
    %117 = vmatprep.subr.bf16.mxu0 0
    %118 = vmatpush1.bf16.msra.mxu0 0
    %119 = vmatprep.mubr.bf16.mxu0 0
    %120 = vmatmul.mubr.bf16.gmra.mrb[0].mxu0 %v85
    %v121 = vpop.f32.mrb[0].mxu0
    %v122 = vadd.f32 0.0, %v121
    %v123 = vpop.f32.mrb[0].mxu0
    %v124 = vpop.f32.mrb[0].mxu0
    %v125 = vadd.f32 0.0, %v124
    %v126 = vpop.f32.mrb[0].mxu0
    %127 = vdwg.mxu0
    %v128 = vpack.c.bf16 %v125, %v122
    %v130 = vunpack.c.l.b16 %v128
    %v131 = vunpack.c.h.b16 %v128
    %v132 = vpack.c.b16 %v130, %v130
    %v133 = vpack.c.b16 %v131, %v131
    %134 = vrot.lane.b32.xlu0 %v132, 96
    %v135 = vpop.permute.xlu0 %134
    %vm136 = vcmask 31744
    %v138 = vsel %vm136, %v132, 0
    %v141 = vsel %vm136, %v135, 0
    %143 = vmatprep.subr.bf16.mxu0 0
    %144 = vmatpush1.bf16.xpose.msra.mxu0 %v141
    %145 = vmatprep.subr.bf16.mxu0 0
    %146 = vmatpush1.bf16.xpose.msra.mxu0 0
    %147 = vmatprep.subr.bf16.mxu0 0
    %148 = vmatpush1.bf16.xpose.msra.mxu0 0
    %149 = vmatprep.subr.bf16.mxu0 0
    %150 = vmatpush1.bf16.xpose.msra.mxu0 0
    %151 = vmatprep.subr.bf16.mxu0 0
    %152 = vmatpush1.bf16.xpose.msra.mxu0 0
    %153 = vmatprep.subr.bf16.mxu0 0
    %154 = vmatpush1.bf16.xpose.msra.mxu0 0
    %155 = vmatprep.subr.bf16.mxu0 0
    %156 = vmatpush1.bf16.xpose.msra.mxu0 0
    %157 = vmatprep.subr.bf16.mxu0 0
    %158 = vmatpush1.bf16.xpose.msra.mxu0 0
    %159 = vmatprep.subr.bf16.mxu0 0
    %160 = vmatpush1.bf16.xpose.msra.mxu0 0
    %161 = vmatprep.subr.bf16.mxu0 0
    %162 = vmatpush1.bf16.xpose.msra.mxu0 0
    %163 = vmatprep.subr.bf16.mxu0 0
    %164 = vmatpush1.bf16.xpose.msra.mxu0 0
    %165 = vmatprep.subr.bf16.mxu0 0
    %166 = vmatpush1.bf16.xpose.msra.mxu0 0
    %167 = vmatprep.subr.bf16.mxu0 0
    %168 = vmatpush1.bf16.xpose.msra.mxu0 0
    %169 = vmatprep.subr.bf16.mxu0 0
    %170 = vmatpush1.bf16.xpose.msra.mxu0 0
    %171 = vmatprep.subr.bf16.mxu0 0
    %172 = vmatpush1.bf16.xpose.msra.mxu0 0
    %173 = vmatprep.subr.bf16.mxu0 0
    %174 = vmatpush1.bf16.xpose.msra.mxu0 0
    %175 = vmatprep.mubr.bf16.mxu0 0
    %176 = vmatmul.mubr.bf16.gmra.mrb[0].mxu0 %v138
    %v177 = vpop.f32.mrb[0].mxu0
    %v178 = vadd.f32 0.0, %v177
    %v179 = vpop.f32.mrb[0].mxu0
    %v180 = vpop.f32.mrb[0].mxu0
    %v181 = vpop.f32.mrb[0].mxu0
    %182 = vdwg.mxu0
    %183 = vrot.lane.b32.xlu0 %v133, 96
    %v184 = vpop.permute.xlu0 %183
    %v186 = vsel %vm136, %v133, 0
    %v189 = vsel %vm136, %v184, 0
    %191 = vmatprep.subr.bf16.mxu0 0
    %192 = vmatpush1.bf16.xpose.msra.mxu0 %v189
    %193 = vmatprep.subr.bf16.mxu0 0
    %194 = vmatpush1.bf16.xpose.msra.mxu0 0
    %195 = vmatprep.subr.bf16.mxu0 0
    %196 = vmatpush1.bf16.xpose.msra.mxu0 0
    %197 = vmatprep.subr.bf16.mxu0 0
    %198 = vmatpush1.bf16.xpose.msra.mxu0 0
    %199 = vmatprep.subr.bf16.mxu0 0
    %200 = vmatpush1.bf16.xpose.msra.mxu0 0
    %201 = vmatprep.subr.bf16.mxu0 0
    %202 = vmatpush1.bf16.xpose.msra.mxu0 0
    %203 = vmatprep.subr.bf16.mxu0 0
    %204 = vmatpush1.bf16.xpose.msra.mxu0 0
    %205 = vmatprep.subr.bf16.mxu0 0
    %206 = vmatpush1.bf16.xpose.msra.mxu0 0
    %207 = vmatprep.subr.bf16.mxu0 0
    %208 = vmatpush1.bf16.xpose.msra.mxu0 0
    %209 = vmatprep.subr.bf16.mxu0 0
    %210 = vmatpush1.bf16.xpose.msra.mxu0 0
    %211 = vmatprep.subr.bf16.mxu0 0
    %212 = vmatpush1.bf16.xpose.msra.mxu0 0
    %213 = vmatprep.subr.bf16.mxu0 0
    %214 = vmatpush1.bf16.xpose.msra.mxu0 0
    %215 = vmatprep.subr.bf16.mxu0 0
    %216 = vmatpush1.bf16.xpose.msra.mxu0 0
    %217 = vmatprep.subr.bf16.mxu0 0
    %218 = vmatpush1.bf16.xpose.msra.mxu0 0
    %219 = vmatprep.subr.bf16.mxu0 0
    %220 = vmatpush1.bf16.xpose.msra.mxu0 0
    %221 = vmatprep.subr.bf16.mxu0 0
    %222 = vmatpush1.bf16.xpose.msra.mxu0 0
    %223 = vmatprep.mubr.bf16.mxu0 0
    %224 = vmatmul.mubr.bf16.gmra.mrb[0].mxu0 %v186
    %v225 = vpop.f32.mrb[0].mxu0
    %v226 = vadd.f32 0.0, %v225
    %v227 = vpop.f32.mrb[0].mxu0
    %v228 = vpop.f32.mrb[0].mxu0
    %v229 = vpop.f32.mrb[0].mxu0
    %230 = vdwg.mxu0
    %vm231 = vcmask 64512
    %v232 = vsel %vm231, %v178, -inf
    %233 = vmax.xlane.f32.xlu0 %v232
    %v234 = vpop.xlane.xlu0 %233
    %v235 = vsel %vm231, %v226, -inf
    %236 = vmax.xlane.f32.xlu0 %v235
    %v237 = vpop.xlane.xlu0 %236
    %v238 = vsub.f32 %v178, %v234
    %v239 = vsub.f32 %v226, %v237
    %v240 = vmul.f32 %v238, 1.442695
    %v241 = vpow.pop %v240
    %v242 = vmul.f32 %v239, 1.442695
    %v243 = vpow.pop %v242
    %v244 = vsel %vm231, %v241, 0.0
    %245 = vadd.xlane.f32.xlu0 %v244
    %v246 = vpop.xlane.xlu0 %245
    %v247 = vsel %vm231, %v243, 0.0
    %248 = vadd.xlane.f32.xlu0 %v247
    %v249 = vpop.xlane.xlu0 %248
    %v250 = vpack.c.bf16 %v241, %v241
    %v251 = vpack.c.bf16 %v243, %v243
    %252 = vrot.lane.b32.xlu0 %v132, 64
    %v253 = vpop.permute.xlu0 %252
    %v255 = vsel %vm231, %v250, 0
    %vm257 = vcmask 1043456
    %v259 = vsel %vm257, %v253, 0
    %261 = vmatprep.subr.bf16.mxu0 0
    %262 = vmatpush1.bf16.msra.mxu0 %v259
    %263 = vmatprep.subr.bf16.mxu0 0
    %264 = vmatpush1.bf16.msra.mxu0 0
    %265 = vmatprep.subr.bf16.mxu0 0
    %266 = vmatpush1.bf16.msra.mxu0 0
    %267 = vmatprep.subr.bf16.mxu0 0
    %268 = vmatpush1.bf16.msra.mxu0 0
    %269 = vmatprep.subr.bf16.mxu0 0
    %270 = vmatpush1.bf16.msra.mxu0 0
    %271 = vmatprep.subr.bf16.mxu0 0
    %272 = vmatpush1.bf16.msra.mxu0 0
    %273 = vmatprep.subr.bf16.mxu0 0
    %274 = vmatpush1.bf16.msra.mxu0 0
    %275 = vmatprep.subr.bf16.mxu0 0
    %276 = vmatpush1.bf16.msra.mxu0 0
    %277 = vmatprep.subr.bf16.mxu0 0
    %278 = vmatpush1.bf16.msra.mxu0 0
    %279 = vmatprep.subr.bf16.mxu0 0
    %280 = vmatpush1.bf16.msra.mxu0 0
    %281 = vmatprep.subr.bf16.mxu0 0
    %282 = vmatpush1.bf16.msra.mxu0 0
    %283 = vmatprep.subr.bf16.mxu0 0
    %284 = vmatpush1.bf16.msra.mxu0 0
    %285 = vmatprep.subr.bf16.mxu0 0
    %286 = vmatpush1.bf16.msra.mxu0 0
    %287 = vmatprep.subr.bf16.mxu0 0
    %288 = vmatpush1.bf16.msra.mxu0 0
    %289 = vmatprep.subr.bf16.mxu0 0
    %290 = vmatpush1.bf16.msra.mxu0 0
    %291 = vmatprep.subr.bf16.mxu0 0
    %292 = vmatpush1.bf16.msra.mxu0 0
    %293 = vmatprep.mubr.bf16.mxu0 0
    %294 = vmatmul.mubr.bf16.gmra.mrb[0].mxu0 %v255
    %v295 = vpop.f32.mrb[0].mxu0
    %v296 = vadd.f32 0.0, %v295
    %v297 = vpop.f32.mrb[0].mxu0
    %v298 = vpop.f32.mrb[0].mxu0
    %v299 = vpop.f32.mrb[0].mxu0
    %300 = vdwg.mxu0
    %301 = vrot.lane.b32.xlu0 %v133, 64
    %v302 = vpop.permute.xlu0 %301
    %v304 = vsel %vm231, %v251, 0
    %v307 = vsel %vm257, %v302, 0
    %309 = vmatprep.subr.bf16.mxu0 0
    %310 = vmatpush1.bf16.msra.mxu0 %v307
    %311 = vmatprep.subr.bf16.mxu0 0
    %312 = vmatpush1.bf16.msra.mxu0 0
    %313 = vmatprep.subr.bf16.mxu0 0
    %314 = vmatpush1.bf16.msra.mxu0 0
    %315 = vmatprep.subr.bf16.mxu0 0
    %316 = vmatpush1.bf16.msra.mxu0 0
    %317 = vmatprep.subr.bf16.mxu0 0
    %318 = vmatpush1.bf16.msra.mxu0 0
    %319 = vmatprep.subr.bf16.mxu0 0
    %320 = vmatpush1.bf16.msra.mxu0 0
    %321 = vmatprep.subr.bf16.mxu0 0
    %322 = vmatpush1.bf16.msra.mxu0 0
    %323 = vmatprep.subr.bf16.mxu0 0
    %324 = vmatpush1.bf16.msra.mxu0 0
    %325 = vmatprep.subr.bf16.mxu0 0
    %326 = vmatpush1.bf16.msra.mxu0 0
    %327 = vmatprep.subr.bf16.mxu0 0
    %328 = vmatpush1.bf16.msra.mxu0 0
    %329 = vmatprep.subr.bf16.mxu0 0
    %330 = vmatpush1.bf16.msra.mxu0 0
    %331 = vmatprep.subr.bf16.mxu0 0
    %332 = vmatpush1.bf16.msra.mxu0 0
    %333 = vmatprep.subr.bf16.mxu0 0
    %334 = vmatpush1.bf16.msra.mxu0 0
    %335 = vmatprep.subr.bf16.mxu0 0
    %336 = vmatpush1.bf16.msra.mxu0 0
    %337 = vmatprep.subr.bf16.mxu0 0
    %338 = vmatpush1.bf16.msra.mxu0 0
    %339 = vmatprep.subr.bf16.mxu0 0
    %340 = vmatpush1.bf16.msra.mxu0 0
    %341 = vmatprep.mubr.bf16.mxu0 0
    %342 = vmatmul.mubr.bf16.gmra.mrb[0].mxu0 %v304
    %v343 = vpop.f32.mrb[0].mxu0
    %v344 = vadd.f32 0.0, %v343
    %v345 = vpop.f32.mrb[0].mxu0
    %v346 = vpop.f32.mrb[0].mxu0
    %v347 = vpop.f32.mrb[0].mxu0
    %348 = vdwg.mxu0
    %v349 = vrcp.pop %v246
    %v350 = vrcp.pop %v249
    %v351 = vmul.f32 %v296, %v349
    %v352 = vmul.f32 %v344, %v350
    %353 = vrot.lane.b32.xlu0 %v132, 124
    %v354 = vpop.permute.xlu0 %353
    %355 = vrot.lane.b32.xlu0 %v132, 92
    %v356 = vpop.permute.xlu0 %355
    %v358 = vsel %vm136, %v354, 0
    %v361 = vsel %vm136, %v356, 0
    %363 = vmatprep.subr.bf16.mxu0 0
    %364 = vmatpush1.bf16.xpose.msra.mxu0 %v361
    %365 = vmatprep.subr.bf16.mxu0 0
    %366 = vmatpush1.bf16.xpose.msra.mxu0 0
    %367 = vmatprep.subr.bf16.mxu0 0
    %368 = vmatpush1.bf16.xpose.msra.mxu0 0
    %369 = vmatprep.subr.bf16.mxu0 0
    %370 = vmatpush1.bf16.xpose.msra.mxu0 0
    %371 = vmatprep.subr.bf16.mxu0 0
    %372 = vmatpush1.bf16.xpose.msra.mxu0 0
    %373 = vmatprep.subr.bf16.mxu0 0
    %374 = vmatpush1.bf16.xpose.msra.mxu0 0
    %375 = vmatprep.subr.bf16.mxu0 0
    %376 = vmatpush1.bf16.xpose.msra.mxu0 0
    %377 = vmatprep.subr.bf16.mxu0 0
    %378 = vmatpush1.bf16.xpose.msra.mxu0 0
    %379 = vmatprep.subr.bf16.mxu0 0
    %380 = vmatpush1.bf16.xpose.msra.mxu0 0
    %381 = vmatprep.subr.bf16.mxu0 0
    %382 = vmatpush1.bf16.xpose.msra.mxu0 0
    %383 = vmatprep.subr.bf16.mxu0 0
    %384 = vmatpush1.bf16.xpose.msra.mxu0 0
    %385 = vmatprep.subr.bf16.mxu0 0
    %386 = vmatpush1.bf16.xpose.msra.mxu0 0
    %387 = vmatprep.subr.bf16.mxu0 0
    %388 = vmatpush1.bf16.xpose.msra.mxu0 0
    %389 = vmatprep.subr.bf16.mxu0 0
    %390 = vmatpush1.bf16.xpose.msra.mxu0 0
    %391 = vmatprep.subr.bf16.mxu0 0
    %392 = vmatpush1.bf16.xpose.msra.mxu0 0
    %393 = vmatprep.subr.bf16.mxu0 0
    %394 = vmatpush1.bf16.xpose.msra.mxu0 0
    %395 = vmatprep.mubr.bf16.mxu0 0
    %396 = vmatmul.mubr.bf16.gmra.mrb[0].mxu0 %v358
    %v397 = vpop.f32.mrb[0].mxu0
    %v398 = vadd.f32 0.0, %v397
    %v399 = vpop.f32.mrb[0].mxu0
    %v400 = vpop.f32.mrb[0].mxu0
    %v401 = vpop.f32.mrb[0].mxu0
    %402 = vdwg.mxu0
    %403 = vrot.lane.b32.xlu0 %v133, 124
    %v404 = vpop.permute.xlu0 %403
    %405 = vrot.lane.b32.xlu0 %v133, 92
    %v406 = vpop.permute.xlu0 %405
    %v408 = vsel %vm136, %v404, 0
    %v411 = vsel %vm136, %v406, 0
    %413 = vmatprep.subr.bf16.mxu0 0
    %414 = vmatpush1.bf16.xpose.msra.mxu0 %v411
    %415 = vmatprep.subr.bf16.mxu0 0
    %416 = vmatpush1.bf16.xpose.msra.mxu0 0
    %417 = vmatprep.subr.bf16.mxu0 0
    %418 = vmatpush1.bf16.xpose.msra.mxu0 0
    %419 = vmatprep.subr.bf16.mxu0 0
    %420 = vmatpush1.bf16.xpose.msra.mxu0 0
    %421 = vmatprep.subr.bf16.mxu0 0
    %422 = vmatpush1.bf16.xpose.msra.mxu0 0
    %423 = vmatprep.subr.bf16.mxu0 0
    %424 = vmatpush1.bf16.xpose.msra.mxu0 0
    %425 = vmatprep.subr.bf16.mxu0 0
    %426 = vmatpush1.bf16.xpose.msra.mxu0 0
    %427 = vmatprep.subr.bf16.mxu0 0
    %428 = vmatpush1.bf16.xpose.msra.mxu0 0
    %429 = vmatprep.subr.bf16.mxu0 0
    %430 = vmatpush1.bf16.xpose.msra.mxu0 0
    %431 = vmatprep.subr.bf16.mxu0 0
    %432 = vmatpush1.bf16.xpose.msra.mxu0 0
    %433 = vmatprep.subr.bf16.mxu0 0
    %434 = vmatpush1.bf16.xpose.msra.mxu0 0
    %435 = vmatprep.subr.bf16.mxu0 0
    %436 = vmatpush1.bf16.xpose.msra.mxu0 0
    %437 = vmatprep.subr.bf16.mxu0 0
    %438 = vmatpush1.bf16.xpose.msra.mxu0 0
    %439 = vmatprep.subr.bf16.mxu0 0
    %440 = vmatpush1.bf16.xpose.msra.mxu0 0
    %441 = vmatprep.subr.bf16.mxu0 0
    %442 = vmatpush1.bf16.xpose.msra.mxu0 0
    %443 = vmatprep.subr.bf16.mxu0 0
    %444 = vmatpush1.bf16.xpose.msra.mxu0 0
    %445 = vmatprep.mubr.bf16.mxu0 0
    %446 = vmatmul.mubr.bf16.gmra.mrb[0].mxu0 %v408
    %v447 = vpop.f32.mrb[0].mxu0
    %v448 = vadd.f32 0.0, %v447
    %v449 = vpop.f32.mrb[0].mxu0
    %v450 = vpop.f32.mrb[0].mxu0
    %v451 = vpop.f32.mrb[0].mxu0
    %452 = vdwg.mxu0
    %v453 = vsel %vm231, %v398, -inf
    %454 = vmax.xlane.f32.xlu0 %v453
    %v455 = vpop.xlane.xlu0 %454
    %v456 = vsel %vm231, %v448, -inf
    %457 = vmax.xlane.f32.xlu0 %v456
    %v458 = vpop.xlane.xlu0 %457
    %v459 = vsub.f32 %v398, %v455
    %v460 = vsub.f32 %v448, %v458
    %v461 = vmul.f32 %v459, 1.442695
    %v462 = vpow.pop %v461
    %v463 = vmul.f32 %v460, 1.442695
    %v464 = vpow.pop %v463
    %v465 = vsel %vm231, %v462, 0.0
    %466 = vadd.xlane.f32.xlu0 %v465
    %v467 = vpop.xlane.xlu0 %466
    %v468 = vsel %vm231, %v464, 0.0
    %469 = vadd.xlane.f32.xlu0 %v468
    %v470 = vpop.xlane.xlu0 %469
    %v471 = vpack.c.bf16 %v462, %v462
    %v472 = vpack.c.bf16 %v464, %v464
    %473 = vrot.lane.b32.xlu0 %v132, 60
    %v474 = vpop.permute.xlu0 %473
    %v476 = vsel %vm231, %v471, 0
    %v479 = vsel %vm257, %v474, 0
    %481 = vmatprep.subr.bf16.mxu0 0
    %482 = vmatpush1.bf16.msra.mxu0 %v479
    %483 = vmatprep.subr.bf16.mxu0 0
    %484 = vmatpush1.bf16.msra.mxu0 0
    %485 = vmatprep.subr.bf16.mxu0 0
    %486 = vmatpush1.bf16.msra.mxu0 0
    %487 = vmatprep.subr.bf16.mxu0 0
    %488 = vmatpush1.bf16.msra.mxu0 0
    %489 = vmatprep.subr.bf16.mxu0 0
    %490 = vmatpush1.bf16.msra.mxu0 0
    %491 = vmatprep.subr.bf16.mxu0 0
    %492 = vmatpush1.bf16.msra.mxu0 0
    %493 = vmatprep.subr.bf16.mxu0 0
    %494 = vmatpush1.bf16.msra.mxu0 0
    %495 = vmatprep.subr.bf16.mxu0 0
    %496 = vmatpush1.bf16.msra.mxu0 0
    %497 = vmatprep.subr.bf16.mxu0 0
    %498 = vmatpush1.bf16.msra.mxu0 0
    %499 = vmatprep.subr.bf16.mxu0 0
    %500 = vmatpush1.bf16.msra.mxu0 0
    %501 = vmatprep.subr.bf16.mxu0 0
    %502 = vmatpush1.bf16.msra.mxu0 0
    %503 = vmatprep.subr.bf16.mxu0 0
    %504 = vmatpush1.bf16.msra.mxu0 0
    %505 = vmatprep.subr.bf16.mxu0 0
    %506 = vmatpush1.bf16.msra.mxu0 0
    %507 = vmatprep.subr.bf16.mxu0 0
    %508 = vmatpush1.bf16.msra.mxu0 0
    %509 = vmatprep.subr.bf16.mxu0 0
    %510 = vmatpush1.bf16.msra.mxu0 0
    %511 = vmatprep.subr.bf16.mxu0 0
    %512 = vmatpush1.bf16.msra.mxu0 0
    %513 = vmatprep.mubr.bf16.mxu0 0
    %514 = vmatmul.mubr.bf16.gmra.mrb[0].mxu0 %v476
    %v515 = vpop.f32.mrb[0].mxu0
    %v516 = vadd.f32 0.0, %v515
    %v517 = vpop.f32.mrb[0].mxu0
    %v518 = vpop.f32.mrb[0].mxu0
    %v519 = vpop.f32.mrb[0].mxu0
    %520 = vdwg.mxu0
    %521 = vrot.lane.b32.xlu0 %v133, 60
    %v522 = vpop.permute.xlu0 %521
    %v524 = vsel %vm231, %v472, 0
    %v527 = vsel %vm257, %v522, 0
    %529 = vmatprep.subr.bf16.mxu0 0
    %530 = vmatpush1.bf16.msra.mxu0 %v527
    %531 = vmatprep.subr.bf16.mxu0 0
    %532 = vmatpush1.bf16.msra.mxu0 0
    %533 = vmatprep.subr.bf16.mxu0 0
    %534 = vmatpush1.bf16.msra.mxu0 0
    %535 = vmatprep.subr.bf16.mxu0 0
    %536 = vmatpush1.bf16.msra.mxu0 0
    %537 = vmatprep.subr.bf16.mxu0 0
    %538 = vmatpush1.bf16.msra.mxu0 0
    %539 = vmatprep.subr.bf16.mxu0 0
    %540 = vmatpush1.bf16.msra.mxu0 0
    %541 = vmatprep.subr.bf16.mxu0 0
    %542 = vmatpush1.bf16.msra.mxu0 0
    %543 = vmatprep.subr.bf16.mxu0 0
    %544 = vmatpush1.bf16.msra.mxu0 0
    %545 = vmatprep.subr.bf16.mxu0 0
    %546 = vmatpush1.bf16.msra.mxu0 0
    %547 = vmatprep.subr.bf16.mxu0 0
    %548 = vmatpush1.bf16.msra.mxu0 0
    %549 = vmatprep.subr.bf16.mxu0 0
    %550 = vmatpush1.bf16.msra.mxu0 0
    %551 = vmatprep.subr.bf16.mxu0 0
    %552 = vmatpush1.bf16.msra.mxu0 0
    %553 = vmatprep.subr.bf16.mxu0 0
    %554 = vmatpush1.bf16.msra.mxu0 0
    %555 = vmatprep.subr.bf16.mxu0 0
    %556 = vmatpush1.bf16.msra.mxu0 0
    %557 = vmatprep.subr.bf16.mxu0 0
    %558 = vmatpush1.bf16.msra.mxu0 0
    %559 = vmatprep.subr.bf16.mxu0 0
    %560 = vmatpush1.bf16.msra.mxu0 0
    %561 = vmatprep.mubr.bf16.mxu0 0
    %562 = vmatmul.mubr.bf16.gmra.mrb[0].mxu0 %v524
    %v563 = vpop.f32.mrb[0].mxu0
    %v564 = vadd.f32 0.0, %v563
    %v565 = vpop.f32.mrb[0].mxu0
    %v566 = vpop.f32.mrb[0].mxu0
    %v567 = vpop.f32.mrb[0].mxu0
    %568 = vdwg.mxu0
    %v569 = vrcp.pop %v467
    %v570 = vrcp.pop %v470
    %v571 = vmul.f32 %v516, %v569
    %v572 = vmul.f32 %v564, %v570
    %573 = vrot.lane.b32.xlu0 %v132, 120
    %v574 = vpop.permute.xlu0 %573
    %575 = vrot.lane.b32.xlu0 %v132, 88
    %v576 = vpop.permute.xlu0 %575
    %v578 = vsel %vm136, %v574, 0
    %v581 = vsel %vm136, %v576, 0
    %583 = vmatprep.subr.bf16.mxu0 0
    %584 = vmatpush1.bf16.xpose.msra.mxu0 %v581
    %585 = vmatprep.subr.bf16.mxu0 0
    %586 = vmatpush1.bf16.xpose.msra.mxu0 0
    %587 = vmatprep.subr.bf16.mxu0 0
    %588 = vmatpush1.bf16.xpose.msra.mxu0 0
    %589 = vmatprep.subr.bf16.mxu0 0
    %590 = vmatpush1.bf16.xpose.msra.mxu0 0
    %591 = vmatprep.subr.bf16.mxu0 0
    %592 = vmatpush1.bf16.xpose.msra.mxu0 0
    %593 = vmatprep.subr.bf16.mxu0 0
    %594 = vmatpush1.bf16.xpose.msra.mxu0 0
    %595 = vmatprep.subr.bf16.mxu0 0
    %596 = vmatpush1.bf16.xpose.msra.mxu0 0
    %597 = vmatprep.subr.bf16.mxu0 0
    %598 = vmatpush1.bf16.xpose.msra.mxu0 0
    %599 = vmatprep.subr.bf16.mxu0 0
    %600 = vmatpush1.bf16.xpose.msra.mxu0 0
    %601 = vmatprep.subr.bf16.mxu0 0
    %602 = vmatpush1.bf16.xpose.msra.mxu0 0
    %603 = vmatprep.subr.bf16.mxu0 0
    %604 = vmatpush1.bf16.xpose.msra.mxu0 0
    %605 = vmatprep.subr.bf16.mxu0 0
    %606 = vmatpush1.bf16.xpose.msra.mxu0 0
    %607 = vmatprep.subr.bf16.mxu0 0
    %608 = vmatpush1.bf16.xpose.msra.mxu0 0
    %609 = vmatprep.subr.bf16.mxu0 0
    %610 = vmatpush1.bf16.xpose.msra.mxu0 0
    %611 = vmatprep.subr.bf16.mxu0 0
    %612 = vmatpush1.bf16.xpose.msra.mxu0 0
    %613 = vmatprep.subr.bf16.mxu0 0
    %614 = vmatpush1.bf16.xpose.msra.mxu0 0
    %615 = vmatprep.mubr.bf16.mxu0 0
    %616 = vmatmul.mubr.bf16.gmra.mrb[0].mxu0 %v578
    %v617 = vpop.f32.mrb[0].mxu0
    %v618 = vadd.f32 0.0, %v617
    %v619 = vpop.f32.mrb[0].mxu0
    %v620 = vpop.f32.mrb[0].mxu0
    %v621 = vpop.f32.mrb[0].mxu0
    %622 = vdwg.mxu0
    %623 = vrot.lane.b32.xlu0 %v133, 120
    %v624 = vpop.permute.xlu0 %623
    %625 = vrot.lane.b32.xlu0 %v133, 88
    %v626 = vpop.permute.xlu0 %625
    %v628 = vsel %vm136, %v624, 0
    %v631 = vsel %vm136, %v626, 0
    %633 = vmatprep.subr.bf16.mxu0 0
    %634 = vmatpush1.bf16.xpose.msra.mxu0 %v631
    %635 = vmatprep.subr.bf16.mxu0 0
    %636 = vmatpush1.bf16.xpose.msra.mxu0 0
    %637 = vmatprep.subr.bf16.mxu0 0
    %638 = vmatpush1.bf16.xpose.msra.mxu0 0
    %639 = vmatprep.subr.bf16.mxu0 0
    %640 = vmatpush1.bf16.xpose.msra.mxu0 0
    %641 = vmatprep.subr.bf16.mxu0 0
    %642 = vmatpush1.bf16.xpose.msra.mxu0 0
    %643 = vmatprep.subr.bf16.mxu0 0
    %644 = vmatpush1.bf16.xpose.msra.mxu0 0
    %645 = vmatprep.subr.bf16.mxu0 0
    %646 = vmatpush1.bf16.xpose.msra.mxu0 0
    %647 = vmatprep.subr.bf16.mxu0 0
    %648 = vmatpush1.bf16.xpose.msra.mxu0 0
    %649 = vmatprep.subr.bf16.mxu0 0
    %650 = vmatpush1.bf16.xpose.msra.mxu0 0
    %651 = vmatprep.subr.bf16.mxu0 0
    %652 = vmatpush1.bf16.xpose.msra.mxu0 0
    %653 = vmatprep.subr.bf16.mxu0 0
    %654 = vmatpush1.bf16.xpose.msra.mxu0 0
    %655 = vmatprep.subr.bf16.mxu0 0
    %656 = vmatpush1.bf16.xpose.msra.mxu0 0
    %657 = vmatprep.subr.bf16.mxu0 0
    %658 = vmatpush1.bf16.xpose.msra.mxu0 0
    %659 = vmatprep.subr.bf16.mxu0 0
    %660 = vmatpush1.bf16.xpose.msra.mxu0 0
    %661 = vmatprep.subr.bf16.mxu0 0
    %662 = vmatpush1.bf16.xpose.msra.mxu0 0
    %663 = vmatprep.subr.bf16.mxu0 0
    %664 = vmatpush1.bf16.xpose.msra.mxu0 0
    %665 = vmatprep.mubr.bf16.mxu0 0
    %666 = vmatmul.mubr.bf16.gmra.mrb[0].mxu0 %v628
    %v667 = vpop.f32.mrb[0].mxu0
    %v668 = vadd.f32 0.0, %v667
    %v669 = vpop.f32.mrb[0].mxu0
    %v670 = vpop.f32.mrb[0].mxu0
    %v671 = vpop.f32.mrb[0].mxu0
    %672 = vdwg.mxu0
    %v673 = vsel %vm231, %v618, -inf
    %674 = vmax.xlane.f32.xlu0 %v673
    %v675 = vpop.xlane.xlu0 %674
    %v676 = vsel %vm231, %v668, -inf
    %677 = vmax.xlane.f32.xlu0 %v676
    %v678 = vpop.xlane.xlu0 %677
    %v679 = vsub.f32 %v618, %v675
    %v680 = vsub.f32 %v668, %v678
    %v681 = vmul.f32 %v679, 1.442695
    %v682 = vpow.pop %v681
    %v683 = vmul.f32 %v680, 1.442695
    %v684 = vpow.pop %v683
    %v685 = vsel %vm231, %v682, 0.0
    %686 = vadd.xlane.f32.xlu0 %v685
    %v687 = vpop.xlane.xlu0 %686
    %v688 = vsel %vm231, %v684, 0.0
    %689 = vadd.xlane.f32.xlu0 %v688
    %v690 = vpop.xlane.xlu0 %689
    %v691 = vpack.c.bf16 %v682, %v682
    %v692 = vpack.c.bf16 %v684, %v684
    %693 = vrot.lane.b32.xlu0 %v132, 56
    %v694 = vpop.permute.xlu0 %693
    %v696 = vsel %vm231, %v691, 0
    %v699 = vsel %vm257, %v694, 0
    %701 = vmatprep.subr.bf16.mxu0 0
    %702 = vmatpush1.bf16.msra.mxu0 %v699
    %703 = vmatprep.subr.bf16.mxu0 0
    %704 = vmatpush1.bf16.msra.mxu0 0
    %705 = vmatprep.subr.bf16.mxu0 0
    %706 = vmatpush1.bf16.msra.mxu0 0
    %707 = vmatprep.subr.bf16.mxu0 0
    %708 = vmatpush1.bf16.msra.mxu0 0
    %709 = vmatprep.subr.bf16.mxu0 0
    %710 = vmatpush1.bf16.msra.mxu0 0
    %711 = vmatprep.subr.bf16.mxu0 0
    %712 = vmatpush1.bf16.msra.mxu0 0
    %713 = vmatprep.subr.bf16.mxu0 0
    %714 = vmatpush1.bf16.msra.mxu0 0
    %715 = vmatprep.subr.bf16.mxu0 0
    %716 = vmatpush1.bf16.msra.mxu0 0
    %717 = vmatprep.subr.bf16.mxu0 0
    %718 = vmatpush1.bf16.msra.mxu0 0
    %719 = vmatprep.subr.bf16.mxu0 0
    %720 = vmatpush1.bf16.msra.mxu0 0
    %721 = vmatprep.subr.bf16.mxu0 0
    %722 = vmatpush1.bf16.msra.mxu0 0
    %723 = vmatprep.subr.bf16.mxu0 0
    %724 = vmatpush1.bf16.msra.mxu0 0
    %725 = vmatprep.subr.bf16.mxu0 0
    %726 = vmatpush1.bf16.msra.mxu0 0
    %727 = vmatprep.subr.bf16.mxu0 0
    %728 = vmatpush1.bf16.msra.mxu0 0
    %729 = vmatprep.subr.bf16.mxu0 0
    %730 = vmatpush1.bf16.msra.mxu0 0
    %731 = vmatprep.subr.bf16.mxu0 0
    %732 = vmatpush1.bf16.msra.mxu0 0
    %733 = vmatprep.mubr.bf16.mxu0 0
    %734 = vmatmul.mubr.bf16.gmra.mrb[0].mxu0 %v696
    %v735 = vpop.f32.mrb[0].mxu0
    %v736 = vadd.f32 0.0, %v735
    %v737 = vpop.f32.mrb[0].mxu0
    %v738 = vpop.f32.mrb[0].mxu0
    %v739 = vpop.f32.mrb[0].mxu0
    %740 = vdwg.mxu0
    %741 = vrot.lane.b32.xlu0 %v133, 56
    %v742 = vpop.permute.xlu0 %741
    %v744 = vsel %vm231, %v692, 0
    %v747 = vsel %vm257, %v742, 0
    %749 = vmatprep.subr.bf16.mxu0 0
    %750 = vmatpush1.bf16.msra.mxu0 %v747
    %751 = vmatprep.subr.bf16.mxu0 0
    %752 = vmatpush1.bf16.msra.mxu0 0
    %753 = vmatprep.subr.bf16.mxu0 0
    %754 = vmatpush1.bf16.msra.mxu0 0
    %755 = vmatprep.subr.bf16.mxu0 0
    %756 = vmatpush1.bf16.msra.mxu0 0
    %757 = vmatprep.subr.bf16.mxu0 0
    %758 = vmatpush1.bf16.msra.mxu0 0
    %759 = vmatprep.subr.bf16.mxu0 0
    %760 = vmatpush1.bf16.msra.mxu0 0
    %761 = vmatprep.subr.bf16.mxu0 0
    %762 = vmatpush1.bf16.msra.mxu0 0
    %763 = vmatprep.subr.bf16.mxu0 0
    %764 = vmatpush1.bf16.msra.mxu0 0
    %765 = vmatprep.subr.bf16.mxu0 0
    %766 = vmatpush1.bf16.msra.mxu0 0
    %767 = vmatprep.subr.bf16.mxu0 0
    %768 = vmatpush1.bf16.msra.mxu0 0
    %769 = vmatprep.subr.bf16.mxu0 0
    %770 = vmatpush1.bf16.msra.mxu0 0
    %771 = vmatprep.subr.bf16.mxu0 0
    %772 = vmatpush1.bf16.msra.mxu0 0
    %773 = vmatprep.subr.bf16.mxu0 0
    %774 = vmatpush1.bf16.msra.mxu0 0
    %775 = vmatprep.subr.bf16.mxu0 0
    %776 = vmatpush1.bf16.msra.mxu0 0
    %777 = vmatprep.subr.bf16.mxu0 0
    %778 = vmatpush1.bf16.msra.mxu0 0
    %779 = vmatprep.subr.bf16.mxu0 0
    %780 = vmatpush1.bf16.msra.mxu0 0
    %781 = vmatprep.mubr.bf16.mxu0 0
    %782 = vmatmul.mubr.bf16.gmra.mrb[0].mxu0 %v744
    %v783 = vpop.f32.mrb[0].mxu0
    %v784 = vadd.f32 0.0, %v783
    %v785 = vpop.f32.mrb[0].mxu0
    %v786 = vpop.f32.mrb[0].mxu0
    %v787 = vpop.f32.mrb[0].mxu0
    %788 = vdwg.mxu0
    %v789 = vrcp.pop %v687
    %v790 = vrcp.pop %v690
    %v791 = vmul.f32 %v736, %v789
    %v792 = vmul.f32 %v784, %v790
    %793 = vrot.lane.b32.xlu0 %v132, 116
    %v794 = vpop.permute.xlu0 %793
    %795 = vrot.lane.b32.xlu0 %v132, 84
    %v796 = vpop.permute.xlu0 %795
    %v798 = vsel %vm136, %v794, 0
    %v801 = vsel %vm136, %v796, 0
    %803 = vmatprep.subr.bf16.mxu0 0
    %804 = vmatpush1.bf16.xpose.msra.mxu0 %v801
    %805 = vmatprep.subr.bf16.mxu0 0
    %806 = vmatpush1.bf16.xpose.msra.mxu0 0
    %807 = vmatprep.subr.bf16.mxu0 0
    %808 = vmatpush1.bf16.xpose.msra.mxu0 0
    %809 = vmatprep.subr.bf16.mxu0 0
    %810 = vmatpush1.bf16.xpose.msra.mxu0 0
    %811 = vmatprep.subr.bf16.mxu0 0
    %812 = vmatpush1.bf16.xpose.msra.mxu0 0
    %813 = vmatprep.subr.bf16.mxu0 0
    %814 = vmatpush1.bf16.xpose.msra.mxu0 0
    %815 = vmatprep.subr.bf16.mxu0 0
    %816 = vmatpush1.bf16.xpose.msra.mxu0 0
    %817 = vmatprep.subr.bf16.mxu0 0
    %818 = vmatpush1.bf16.xpose.msra.mxu0 0
    %819 = vmatprep.subr.bf16.mxu0 0
    %820 = vmatpush1.bf16.xpose.msra.mxu0 0
    %821 = vmatprep.subr.bf16.mxu0 0
    %822 = vmatpush1.bf16.xpose.msra.mxu0 0
    %823 = vmatprep.subr.bf16.mxu0 0
    %824 = vmatpush1.bf16.xpose.msra.mxu0 0
    %825 = vmatprep.subr.bf16.mxu0 0
    %826 = vmatpush1.bf16.xpose.msra.mxu0 0
    %827 = vmatprep.subr.bf16.mxu0 0
    %828 = vmatpush1.bf16.xpose.msra.mxu0 0
    %829 = vmatprep.subr.bf16.mxu0 0
    %830 = vmatpush1.bf16.xpose.msra.mxu0 0
    %831 = vmatprep.subr.bf16.mxu0 0
    %832 = vmatpush1.bf16.xpose.msra.mxu0 0
    %833 = vmatprep.subr.bf16.mxu0 0
    %834 = vmatpush1.bf16.xpose.msra.mxu0 0
    %835 = vmatprep.mubr.bf16.mxu0 0
    %836 = vmatmul.mubr.bf16.gmra.mrb[0].mxu0 %v798
    %v837 = vpop.f32.mrb[0].mxu0
    %v838 = vadd.f32 0.0, %v837
    %v839 = vpop.f32.mrb[0].mxu0
    %v840 = vpop.f32.mrb[0].mxu0
    %v841 = vpop.f32.mrb[0].mxu0
    %842 = vdwg.mxu0
    %843 = vrot.lane.b32.xlu0 %v133, 116
    %v844 = vpop.permute.xlu0 %843
    %845 = vrot.lane.b32.xlu0 %v133, 84
    %v846 = vpop.permute.xlu0 %845
    %v848 = vsel %vm136, %v844, 0
    %v851 = vsel %vm136, %v846, 0
    %853 = vmatprep.subr.bf16.mxu0 0
    %854 = vmatpush1.bf16.xpose.msra.mxu0 %v851
    %855 = vmatprep.subr.bf16.mxu0 0
    %856 = vmatpush1.bf16.xpose.msra.mxu0 0
    %857 = vmatprep.subr.bf16.mxu0 0
    %858 = vmatpush1.bf16.xpose.msra.mxu0 0
    %859 = vmatprep.subr.bf16.mxu0 0
    %860 = vmatpush1.bf16.xpose.msra.mxu0 0
    %861 = vmatprep.subr.bf16.mxu0 0
    %862 = vmatpush1.bf16.xpose.msra.mxu0 0
    %863 = vmatprep.subr.bf16.mxu0 0
    %864 = vmatpush1.bf16.xpose.msra.mxu0 0
    %865 = vmatprep.subr.bf16.mxu0 0
    %866 = vmatpush1.bf16.xpose.msra.mxu0 0
    %867 = vmatprep.subr.bf16.mxu0 0
    %868 = vmatpush1.bf16.xpose.msra.mxu0 0
    %869 = vmatprep.subr.bf16.mxu0 0
    %870 = vmatpush1.bf16.xpose.msra.mxu0 0
    %871 = vmatprep.subr.bf16.mxu0 0
    %872 = vmatpush1.bf16.xpose.msra.mxu0 0
    %873 = vmatprep.subr.bf16.mxu0 0
    %874 = vmatpush1.bf16.xpose.msra.mxu0 0
    %875 = vmatprep.subr.bf16.mxu0 0
    %876 = vmatpush1.bf16.xpose.msra.mxu0 0
    %877 = vmatprep.subr.bf16.mxu0 0
    %878 = vmatpush1.bf16.xpose.msra.mxu0 0
    %879 = vmatprep.subr.bf16.mxu0 0
    %880 = vmatpush1.bf16.xpose.msra.mxu0 0
    %881 = vmatprep.subr.bf16.mxu0 0
    %882 = vmatpush1.bf16.xpose.msra.mxu0 0
    %883 = vmatprep.subr.bf16.mxu0 0
    %884 = vmatpush1.bf16.xpose.msra.mxu0 0
    %885 = vmatprep.mubr.bf16.mxu0 0
    %886 = vmatmul.mubr.bf16.gmra.mrb[0].mxu0 %v848
    %v887 = vpop.f32.mrb[0].mxu0
    %v888 = vadd.f32 0.0, %v887
    %v889 = vpop.f32.mrb[0].mxu0
    %v890 = vpop.f32.mrb[0].mxu0
    %v891 = vpop.f32.mrb[0].mxu0
    %892 = vdwg.mxu0
    %v893 = vsel %vm231, %v838, -inf
    %894 = vmax.xlane.f32.xlu0 %v893
    %v895 = vpop.xlane.xlu0 %894
    %v896 = vsel %vm231, %v888, -inf
    %897 = vmax.xlane.f32.xlu0 %v896
    %v898 = vpop.xlane.xlu0 %897
    %v899 = vsub.f32 %v838, %v895
    %v900 = vsub.f32 %v888, %v898
    %v901 = vmul.f32 %v899, 1.442695
    %v902 = vpow.pop %v901
    %v903 = vmul.f32 %v900, 1.442695
    %v904 = vpow.pop %v903
    %v905 = vsel %vm231, %v902, 0.0
    %906 = vadd.xlane.f32.xlu0 %v905
    %v907 = vpop.xlane.xlu0 %906
    %v908 = vsel %vm231, %v904, 0.0
    %909 = vadd.xlane.f32.xlu0 %v908
    %v910 = vpop.xlane.xlu0 %909
    %v911 = vpack.c.bf16 %v902, %v902
    %v912 = vpack.c.bf16 %v904, %v904
    %913 = vrot.lane.b32.xlu0 %v132, 52
    %v914 = vpop.permute.xlu0 %913
    %v916 = vsel %vm231, %v911, 0
    %v919 = vsel %vm257, %v914, 0
    %921 = vmatprep.subr.bf16.mxu0 0
    %922 = vmatpush1.bf16.msra.mxu0 %v919
    %923 = vmatprep.subr.bf16.mxu0 0
    %924 = vmatpush1.bf16.msra.mxu0 0
    %925 = vmatprep.subr.bf16.mxu0 0
    %926 = vmatpush1.bf16.msra.mxu0 0
    %927 = vmatprep.subr.bf16.mxu0 0
    %928 = vmatpush1.bf16.msra.mxu0 0
    %929 = vmatprep.subr.bf16.mxu0 0
    %930 = vmatpush1.bf16.msra.mxu0 0
    %931 = vmatprep.subr.bf16.mxu0 0
    %932 = vmatpush1.bf16.msra.mxu0 0
    %933 = vmatprep.subr.bf16.mxu0 0
    %934 = vmatpush1.bf16.msra.mxu0 0
    %935 = vmatprep.subr.bf16.mxu0 0
    %936 = vmatpush1.bf16.msra.mxu0 0
    %937 = vmatprep.subr.bf16.mxu0 0
    %938 = vmatpush1.bf16.msra.mxu0 0
    %939 = vmatprep.subr.bf16.mxu0 0
    %940 = vmatpush1.bf16.msra.mxu0 0
    %941 = vmatprep.subr.bf16.mxu0 0
    %942 = vmatpush1.bf16.msra.mxu0 0
    %943 = vmatprep.subr.bf16.mxu0 0
    %944 = vmatpush1.bf16.msra.mxu0 0
    %945 = vmatprep.subr.bf16.mxu0 0
    %946 = vmatpush1.bf16.msra.mxu0 0
    %947 = vmatprep.subr.bf16.mxu0 0
    %948 = vmatpush1.bf16.msra.mxu0 0
    %949 = vmatprep.subr.bf16.mxu0 0
    %950 = vmatpush1.bf16.msra.mxu0 0
    %951 = vmatprep.subr.bf16.mxu0 0
    %952 = vmatpush1.bf16.msra.mxu0 0
    %953 = vmatprep.mubr.bf16.mxu0 0
    %954 = vmatmul.mubr.bf16.gmra.mrb[0].mxu0 %v916
    %v955 = vpop.f32.mrb[0].mxu0
    %v956 = vadd.f32 0.0, %v955
    %v957 = vpop.f32.mrb[0].mxu0
    %v958 = vpop.f32.mrb[0].mxu0
    %v959 = vpop.f32.mrb[0].mxu0
    %960 = vdwg.mxu0
    %961 = vrot.lane.b32.xlu0 %v133, 52
    %v962 = vpop.permute.xlu0 %961
    %v964 = vsel %vm231, %v912, 0
    %v967 = vsel %vm257, %v962, 0
    %969 = vmatprep.subr.bf16.mxu0 0
    %970 = vmatpush1.bf16.msra.mxu0 %v967
    %971 = vmatprep.subr.bf16.mxu0 0
    %972 = vmatpush1.bf16.msra.mxu0 0
    %973 = vmatprep.subr.bf16.mxu0 0
    %974 = vmatpush1.bf16.msra.mxu0 0
    %975 = vmatprep.subr.bf16.mxu0 0
    %976 = vmatpush1.bf16.msra.mxu0 0
    %977 = vmatprep.subr.bf16.mxu0 0
    %978 = vmatpush1.bf16.msra.mxu0 0
    %979 = vmatprep.subr.bf16.mxu0 0
    %980 = vmatpush1.bf16.msra.mxu0 0
    %981 = vmatprep.subr.bf16.mxu0 0
    %982 = vmatpush1.bf16.msra.mxu0 0
    %983 = vmatprep.subr.bf16.mxu0 0
    %984 = vmatpush1.bf16.msra.mxu0 0
    %985 = vmatprep.subr.bf16.mxu0 0
    %986 = vmatpush1.bf16.msra.mxu0 0
    %987 = vmatprep.subr.bf16.mxu0 0
    %988 = vmatpush1.bf16.msra.mxu0 0
    %989 = vmatprep.subr.bf16.mxu0 0
    %990 = vmatpush1.bf16.msra.mxu0 0
    %991 = vmatprep.subr.bf16.mxu0 0
    %992 = vmatpush1.bf16.msra.mxu0 0
    %993 = vmatprep.subr.bf16.mxu0 0
    %994 = vmatpush1.bf16.msra.mxu0 0
    %995 = vmatprep.subr.bf16.mxu0 0
    %996 = vmatpush1.bf16.msra.mxu0 0
    %997 = vmatprep.subr.bf16.mxu0 0
    %998 = vmatpush1.bf16.msra.mxu0 0
    %999 = vmatprep.subr.bf16.mxu0 0
    %1000 = vmatpush1.bf16.msra.mxu0 0
    %1001 = vmatprep.mubr.bf16.mxu0 0
    %1002 = vmatmul.mubr.bf16.gmra.mrb[0].mxu0 %v964
    %v1003 = vpop.f32.mrb[0].mxu0
    %v1004 = vadd.f32 0.0, %v1003
    %v1005 = vpop.f32.mrb[0].mxu0
    %v1006 = vpop.f32.mrb[0].mxu0
    %v1007 = vpop.f32.mrb[0].mxu0
    %1008 = vdwg.mxu0
    %v1009 = vrcp.pop %v907
    %v1010 = vrcp.pop %v910
    %v1011 = vmul.f32 %v956, %v1009
    %v1012 = vmul.f32 %v1004, %v1010
    %1013 = vrot.lane.b32.xlu0 %v132, 112
    %v1014 = vpop.permute.xlu0 %1013
    %1015 = vrot.lane.b32.xlu0 %v132, 80
    %v1016 = vpop.permute.xlu0 %1015
    %v1018 = vsel %vm136, %v1014, 0
    %v1021 = vsel %vm136, %v1016, 0
    %1023 = vmatprep.subr.bf16.mxu0 0
    %1024 = vmatpush1.bf16.xpose.msra.mxu0 %v1021
    %1025 = vmatprep.subr.bf16.mxu0 0
    %1026 = vmatpush1.bf16.xpose.msra.mxu0 0
    %1027 = vmatprep.subr.bf16.mxu0 0
    %1028 = vmatpush1.bf16.xpose.msra.mxu0 0
    %1029 = vmatprep.subr.bf16.mxu0 0
    %1030 = vmatpush1.bf16.xpose.msra.mxu0 0
    %1031 = vmatprep.subr.bf16.mxu0 0
    %1032 = vmatpush1.bf16.xpose.msra.mxu0 0
    %1033 = vmatprep.subr.bf16.mxu0 0
    %1034 = vmatpush1.bf16.xpose.msra.mxu0 0
    %1035 = vmatprep.subr.bf16.mxu0 0
    %1036 = vmatpush1.bf16.xpose.msra.mxu0 0
    %1037 = vmatprep.subr.bf16.mxu0 0
    %1038 = vmatpush1.bf16.xpose.msra.mxu0 0
    %1039 = vmatprep.subr.bf16.mxu0 0
    %1040 = vmatpush1.bf16.xpose.msra.mxu0 0
    %1041 = vmatprep.subr.bf16.mxu0 0
    %1042 = vmatpush1.bf16.xpose.msra.mxu0 0
    %1043 = vmatprep.subr.bf16.mxu0 0
    %1044 = vmatpush1.bf16.xpose.msra.mxu0 0
    %1045 = vmatprep.subr.bf16.mxu0 0
    %1046 = vmatpush1.bf16.xpose.msra.mxu0 0
    %1047 = vmatprep.subr.bf16.mxu0 0
    %1048 = vmatpush1.bf16.xpose.msra.mxu0 0
    %1049 = vmatprep.subr.bf16.mxu0 0
    %1050 = vmatpush1.bf16.xpose.msra.mxu0 0
    %1051 = vmatprep.subr.bf16.mxu0 0
    %1052 = vmatpush1.bf16.xpose.msra.mxu0 0
    %1053 = vmatprep.subr.bf16.mxu0 0
    %1054 = vmatpush1.bf16.xpose.msra.mxu0 0
    %1055 = vmatprep.mubr.bf16.mxu0 0
    %1056 = vmatmul.mubr.bf16.gmra.mrb[0].mxu0 %v1018
    %v1057 = vpop.f32.mrb[0].mxu0
    %v1058 = vadd.f32 0.0, %v1057
    %v1059 = vpop.f32.mrb[0].mxu0
    %v1060 = vpop.f32.mrb[0].mxu0
    %v1061 = vpop.f32.mrb[0].mxu0
    %1062 = vdwg.mxu0
    %1063 = vrot.lane.b32.xlu0 %v133, 112
    %v1064 = vpop.permute.xlu0 %1063
    %1065 = vrot.lane.b32.xlu0 %v133, 80
    %v1066 = vpop.permute.xlu0 %1065
    %v1068 = vsel %vm136, %v1064, 0
    %v1071 = vsel %vm136, %v1066, 0
    %1073 = vmatprep.subr.bf16.mxu0 0
    %1074 = vmatpush1.bf16.xpose.msra.mxu0 %v1071
    %1075 = vmatprep.subr.bf16.mxu0 0
    %1076 = vmatpush1.bf16.xpose.msra.mxu0 0
    %1077 = vmatprep.subr.bf16.mxu0 0
    %1078 = vmatpush1.bf16.xpose.msra.mxu0 0
    %1079 = vmatprep.subr.bf16.mxu0 0
    %1080 = vmatpush1.bf16.xpose.msra.mxu0 0
    %1081 = vmatprep.subr.bf16.mxu0 0
    %1082 = vmatpush1.bf16.xpose.msra.mxu0 0
    %1083 = vmatprep.subr.bf16.mxu0 0
    %1084 = vmatpush1.bf16.xpose.msra.mxu0 0
    %1085 = vmatprep.subr.bf16.mxu0 0
    %1086 = vmatpush1.bf16.xpose.msra.mxu0 0
    %1087 = vmatprep.subr.bf16.mxu0 0
    %1088 = vmatpush1.bf16.xpose.msra.mxu0 0
    %1089 = vmatprep.subr.bf16.mxu0 0
    %1090 = vmatpush1.bf16.xpose.msra.mxu0 0
    %1091 = vmatprep.subr.bf16.mxu0 0
    %1092 = vmatpush1.bf16.xpose.msra.mxu0 0
    %1093 = vmatprep.subr.bf16.mxu0 0
    %1094 = vmatpush1.bf16.xpose.msra.mxu0 0
    %1095 = vmatprep.subr.bf16.mxu0 0
    %1096 = vmatpush1.bf16.xpose.msra.mxu0 0
    %1097 = vmatprep.subr.bf16.mxu0 0
    %1098 = vmatpush1.bf16.xpose.msra.mxu0 0
    %1099 = vmatprep.subr.bf16.mxu0 0
    %1100 = vmatpush1.bf16.xpose.msra.mxu0 0
    %1101 = vmatprep.subr.bf16.mxu0 0
    %1102 = vmatpush1.bf16.xpose.msra.mxu0 0
    %1103 = vmatprep.subr.bf16.mxu0 0
    %1104 = vmatpush1.bf16.xpose.msra.mxu0 0
    %1105 = vmatprep.mubr.bf16.mxu0 0
    %1106 = vmatmul.mubr.bf16.gmra.mrb[0].mxu0 %v1068
    %v1107 = vpop.f32.mrb[0].mxu0
    %v1108 = vadd.f32 0.0, %v1107
    %v1109 = vpop.f32.mrb[0].mxu0
    %v1110 = vpop.f32.mrb[0].mxu0
    %v1111 = vpop.f32.mrb[0].mxu0
    %1112 = vdwg.mxu0
    %v1113 = vsel %vm231, %v1058, -inf
    %1114 = vmax.xlane.f32.xlu0 %v1113
    %v1115 = vpop.xlane.xlu0 %1114
    %v1116 = vsel %vm231, %v1108, -inf
    %1117 = vmax.xlane.f32.xlu0 %v1116
    %v1118 = vpop.xlane.xlu0 %1117
    %v1119 = vsub.f32 %v1058, %v1115
    %v1120 = vsub.f32 %v1108, %v1118
    %v1121 = vmul.f32 %v1119, 1.442695
    %v1122 = vpow.pop %v1121
    %v1123 = vmul.f32 %v1120, 1.442695
    %v1124 = vpow.pop %v1123
    %v1125 = vsel %vm231, %v1122, 0.0
    %1126 = vadd.xlane.f32.xlu0 %v1125
    %v1127 = vpop.xlane.xlu0 %1126
    %v1128 = vsel %vm231, %v1124, 0.0
    %1129 = vadd.xlane.f32.xlu0 %v1128
    %v1130 = vpop.xlane.xlu0 %1129
    %v1131 = vpack.c.bf16 %v1122, %v1122
    %v1132 = vpack.c.bf16 %v1124, %v1124
    %1133 = vrot.lane.b32.xlu0 %v132, 48
    %v1134 = vpop.permute.xlu0 %1133
    %v1136 = vsel %vm231, %v1131, 0
    %v1139 = vsel %vm257, %v1134, 0
    %1141 = vmatprep.subr.bf16.mxu0 0
    %1142 = vmatpush1.bf16.msra.mxu0 %v1139
    %1143 = vmatprep.subr.bf16.mxu0 0
    %1144 = vmatpush1.bf16.msra.mxu0 0
    %1145 = vmatprep.subr.bf16.mxu0 0
    %1146 = vmatpush1.bf16.msra.mxu0 0
    %1147 = vmatprep.subr.bf16.mxu0 0
    %1148 = vmatpush1.bf16.msra.mxu0 0
    %1149 = vmatprep.subr.bf16.mxu0 0
    %1150 = vmatpush1.bf16.msra.mxu0 0
    %1151 = vmatprep.subr.bf16.mxu0 0
    %1152 = vmatpush1.bf16.msra.mxu0 0
    %1153 = vmatprep.subr.bf16.mxu0 0
    %1154 = vmatpush1.bf16.msra.mxu0 0
    %1155 = vmatprep.subr.bf16.mxu0 0
    %1156 = vmatpush1.bf16.msra.mxu0 0
    %1157 = vmatprep.subr.bf16.mxu0 0
    %1158 = vmatpush1.bf16.msra.mxu0 0
    %1159 = vmatprep.subr.bf16.mxu0 0
    %1160 = vmatpush1.bf16.msra.mxu0 0
    %1161 = vmatprep.subr.bf16.mxu0 0
    %1162 = vmatpush1.bf16.msra.mxu0 0
    %1163 = vmatprep.subr.bf16.mxu0 0
    %1164 = vmatpush1.bf16.msra.mxu0 0
    %1165 = vmatprep.subr.bf16.mxu0 0
    %1166 = vmatpush1.bf16.msra.mxu0 0
    %1167 = vmatprep.subr.bf16.mxu0 0
    %1168 = vmatpush1.bf16.msra.mxu0 0
    %1169 = vmatprep.subr.bf16.mxu0 0
    %1170 = vmatpush1.bf16.msra.mxu0 0
    %1171 = vmatprep.subr.bf16.mxu0 0
    %1172 = vmatpush1.bf16.msra.mxu0 0
    %1173 = vmatprep.mubr.bf16.mxu0 0
    %1174 = vmatmul.mubr.bf16.gmra.mrb[0].mxu0 %v1136
    %v1175 = vpop.f32.mrb[0].mxu0
    %v1176 = vadd.f32 0.0, %v1175
    %v1177 = vpop.f32.mrb[0].mxu0
    %v1178 = vpop.f32.mrb[0].mxu0
    %v1179 = vpop.f32.mrb[0].mxu0
    %1180 = vdwg.mxu0
    %1181 = vrot.lane.b32.xlu0 %v133, 48
    %v1182 = vpop.permute.xlu0 %1181
    %v1184 = vsel %vm231, %v1132, 0
    %v1187 = vsel %vm257, %v1182, 0
    %1189 = vmatprep.subr.bf16.mxu0 0
    %1190 = vmatpush1.bf16.msra.mxu0 %v1187
    %1191 = vmatprep.subr.bf16.mxu0 0
    %1192 = vmatpush1.bf16.msra.mxu0 0
    %1193 = vmatprep.subr.bf16.mxu0 0
    %1194 = vmatpush1.bf16.msra.mxu0 0
    %1195 = vmatprep.subr.bf16.mxu0 0
    %1196 = vmatpush1.bf16.msra.mxu0 0
    %1197 = vmatprep.subr.bf16.mxu0 0
    %1198 = vmatpush1.bf16.msra.mxu0 0
    %1199 = vmatprep.subr.bf16.mxu0 0
    %1200 = vmatpush1.bf16.msra.mxu0 0
    %1201 = vmatprep.subr.bf16.mxu0 0
    %1202 = vmatpush1.bf16.msra.mxu0 0
    %1203 = vmatprep.subr.bf16.mxu0 0
    %1204 = vmatpush1.bf16.msra.mxu0 0
    %1205 = vmatprep.subr.bf16.mxu0 0
    %1206 = vmatpush1.bf16.msra.mxu0 0
    %1207 = vmatprep.subr.bf16.mxu0 0
    %1208 = vmatpush1.bf16.msra.mxu0 0
    %1209 = vmatprep.subr.bf16.mxu0 0
    %1210 = vmatpush1.bf16.msra.mxu0 0
    %1211 = vmatprep.subr.bf16.mxu0 0
    %1212 = vmatpush1.bf16.msra.mxu0 0
    %1213 = vmatprep.subr.bf16.mxu0 0
    %1214 = vmatpush1.bf16.msra.mxu0 0
    %1215 = vmatprep.subr.bf16.mxu0 0
    %1216 = vmatpush1.bf16.msra.mxu0 0
    %1217 = vmatprep.subr.bf16.mxu0 0
    %1218 = vmatpush1.bf16.msra.mxu0 0
    %1219 = vmatprep.subr.bf16.mxu0 0
    %1220 = vmatpush1.bf16.msra.mxu0 0
    %1221 = vmatprep.mubr.bf16.mxu0 0
    %1222 = vmatmul.mubr.bf16.gmra.mrb[0].mxu0 %v1184
    %v1223 = vpop.f32.mrb[0].mxu0
    %v1224 = vadd.f32 0.0, %v1223
    %v1225 = vpop.f32.mrb[0].mxu0
    %v1226 = vpop.f32.mrb[0].mxu0
    %v1227 = vpop.f32.mrb[0].mxu0
    %1228 = vdwg.mxu0
    %v1229 = vrcp.pop %v1127
    %v1230 = vrcp.pop %v1130
    %v1231 = vmul.f32 %v1176, %v1229
    %v1232 = vmul.f32 %v1224, %v1230
    %1233 = vrot.lane.b32.xlu0 %v132, 108
    %v1234 = vpop.permute.xlu0 %1233
    %1235 = vrot.lane.b32.xlu0 %v132, 76
    %v1236 = vpop.permute.xlu0 %1235
    %v1238 = vsel %vm136, %v1234, 0
    %v1241 = vsel %vm136, %v1236, 0
    %1243 = vmatprep.subr.bf16.mxu0 0
    %1244 = vmatpush1.bf16.xpose.msra.mxu0 %v1241
    %1245 = vmatprep.subr.bf16.mxu0 0
    %1246 = vmatpush1.bf16.xpose.msra.mxu0 0
    %1247 = vmatprep.subr.bf16.mxu0 0
    %1248 = vmatpush1.bf16.xpose.msra.mxu0 0
    %1249 = vmatprep.subr.bf16.mxu0 0
    %1250 = vmatpush1.bf16.xpose.msra.mxu0 0
    %1251 = vmatprep.subr.bf16.mxu0 0
    %1252 = vmatpush1.bf16.xpose.msra.mxu0 0
    %1253 = vmatprep.subr.bf16.mxu0 0
    %1254 = vmatpush1.bf16.xpose.msra.mxu0 0
    %1255 = vmatprep.subr.bf16.mxu0 0
    %1256 = vmatpush1.bf16.xpose.msra.mxu0 0
    %1257 = vmatprep.subr.bf16.mxu0 0
    %1258 = vmatpush1.bf16.xpose.msra.mxu0 0
    %1259 = vmatprep.subr.bf16.mxu0 0
    %1260 = vmatpush1.bf16.xpose.msra.mxu0 0
    %1261 = vmatprep.subr.bf16.mxu0 0
    %1262 = vmatpush1.bf16.xpose.msra.mxu0 0
    %1263 = vmatprep.subr.bf16.mxu0 0
    %1264 = vmatpush1.bf16.xpose.msra.mxu0 0
    %1265 = vmatprep.subr.bf16.mxu0 0
    %1266 = vmatpush1.bf16.xpose.msra.mxu0 0
    %1267 = vmatprep.subr.bf16.mxu0 0
    %1268 = vmatpush1.bf16.xpose.msra.mxu0 0
    %1269 = vmatprep.subr.bf16.mxu0 0
    %1270 = vmatpush1.bf16.xpose.msra.mxu0 0
    %1271 = vmatprep.subr.bf16.mxu0 0
    %1272 = vmatpush1.bf16.xpose.msra.mxu0 0
    %1273 = vmatprep.subr.bf16.mxu0 0
    %1274 = vmatpush1.bf16.xpose.msra.mxu0 0
    %1275 = vmatprep.mubr.bf16.mxu0 0
    %1276 = vmatmul.mubr.bf16.gmra.mrb[0].mxu0 %v1238
    %v1277 = vpop.f32.mrb[0].mxu0
    %v1278 = vadd.f32 0.0, %v1277
    %v1279 = vpop.f32.mrb[0].mxu0
    %v1280 = vpop.f32.mrb[0].mxu0
    %v1281 = vpop.f32.mrb[0].mxu0
    %1282 = vdwg.mxu0
    %1283 = vrot.lane.b32.xlu0 %v133, 108
    %v1284 = vpop.permute.xlu0 %1283
    %1285 = vrot.lane.b32.xlu0 %v133, 76
    %v1286 = vpop.permute.xlu0 %1285
    %v1288 = vsel %vm136, %v1284, 0
    %v1291 = vsel %vm136, %v1286, 0
    %1293 = vmatprep.subr.bf16.mxu0 0
    %1294 = vmatpush1.bf16.xpose.msra.mxu0 %v1291
    %1295 = vmatprep.subr.bf16.mxu0 0
    %1296 = vmatpush1.bf16.xpose.msra.mxu0 0
    %1297 = vmatprep.subr.bf16.mxu0 0
    %1298 = vmatpush1.bf16.xpose.msra.mxu0 0
    %1299 = vmatprep.subr.bf16.mxu0 0
    %1300 = vmatpush1.bf16.xpose.msra.mxu0 0
    %1301 = vmatprep.subr.bf16.mxu0 0
    %1302 = vmatpush1.bf16.xpose.msra.mxu0 0
    %1303 = vmatprep.subr.bf16.mxu0 0
    %1304 = vmatpush1.bf16.xpose.msra.mxu0 0
    %1305 = vmatprep.subr.bf16.mxu0 0
    %1306 = vmatpush1.bf16.xpose.msra.mxu0 0
    %1307 = vmatprep.subr.bf16.mxu0 0
    %1308 = vmatpush1.bf16.xpose.msra.mxu0 0
    %1309 = vmatprep.subr.bf16.mxu0 0
    %1310 = vmatpush1.bf16.xpose.msra.mxu0 0
    %1311 = vmatprep.subr.bf16.mxu0 0
    %1312 = vmatpush1.bf16.xpose.msra.mxu0 0
    %1313 = vmatprep.subr.bf16.mxu0 0
    %1314 = vmatpush1.bf16.xpose.msra.mxu0 0
    %1315 = vmatprep.subr.bf16.mxu0 0
    %1316 = vmatpush1.bf16.xpose.msra.mxu0 0
    %1317 = vmatprep.subr.bf16.mxu0 0
    %1318 = vmatpush1.bf16.xpose.msra.mxu0 0
    %1319 = vmatprep.subr.bf16.mxu0 0
    %1320 = vmatpush1.bf16.xpose.msra.mxu0 0
    %1321 = vmatprep.subr.bf16.mxu0 0
    %1322 = vmatpush1.bf16.xpose.msra.mxu0 0
    %1323 = vmatprep.subr.bf16.mxu0 0
    %1324 = vmatpush1.bf16.xpose.msra.mxu0 0
    %1325 = vmatprep.mubr.bf16.mxu0 0
    %1326 = vmatmul.mubr.bf16.gmra.mrb[0].mxu0 %v1288
    %v1327 = vpop.f32.mrb[0].mxu0
    %v1328 = vadd.f32 0.0, %v1327
    %v1329 = vpop.f32.mrb[0].mxu0
    %v1330 = vpop.f32.mrb[0].mxu0
    %v1331 = vpop.f32.mrb[0].mxu0
    %1332 = vdwg.mxu0
    %v1333 = vsel %vm231, %v1278, -inf
    %1334 = vmax.xlane.f32.xlu0 %v1333
    %v1335 = vpop.xlane.xlu0 %1334
    %v1336 = vsel %vm231, %v1328, -inf
    %1337 = vmax.xlane.f32.xlu0 %v1336
    %v1338 = vpop.xlane.xlu0 %1337
    %v1339 = vsub.f32 %v1278, %v1335
    %v1340 = vsub.f32 %v1328, %v1338
    %v1341 = vmul.f32 %v1339, 1.442695
    %v1342 = vpow.pop %v1341
    %v1343 = vmul.f32 %v1340, 1.442695
    %v1344 = vpow.pop %v1343
    %v1345 = vsel %vm231, %v1342, 0.0
    %1346 = vadd.xlane.f32.xlu0 %v1345
    %v1347 = vpop.xlane.xlu0 %1346
    %v1348 = vsel %vm231, %v1344, 0.0
    %1349 = vadd.xlane.f32.xlu0 %v1348
    %v1350 = vpop.xlane.xlu0 %1349
    %v1351 = vpack.c.bf16 %v1342, %v1342
    %v1352 = vpack.c.bf16 %v1344, %v1344
    %1353 = vrot.lane.b32.xlu0 %v132, 44
    %v1354 = vpop.permute.xlu0 %1353
    %v1356 = vsel %vm231, %v1351, 0
    %v1359 = vsel %vm257, %v1354, 0
    %1361 = vmatprep.subr.bf16.mxu0 0
    %1362 = vmatpush1.bf16.msra.mxu0 %v1359
    %1363 = vmatprep.subr.bf16.mxu0 0
    %1364 = vmatpush1.bf16.msra.mxu0 0
    %1365 = vmatprep.subr.bf16.mxu0 0
    %1366 = vmatpush1.bf16.msra.mxu0 0
    %1367 = vmatprep.subr.bf16.mxu0 0
    %1368 = vmatpush1.bf16.msra.mxu0 0
    %1369 = vmatprep.subr.bf16.mxu0 0
    %1370 = vmatpush1.bf16.msra.mxu0 0
    %1371 = vmatprep.subr.bf16.mxu0 0
    %1372 = vmatpush1.bf16.msra.mxu0 0
    %1373 = vmatprep.subr.bf16.mxu0 0
    %1374 = vmatpush1.bf16.msra.mxu0 0
    %1375 = vmatprep.subr.bf16.mxu0 0
    %1376 = vmatpush1.bf16.msra.mxu0 0
    %1377 = vmatprep.subr.bf16.mxu0 0
    %1378 = vmatpush1.bf16.msra.mxu0 0
    %1379 = vmatprep.subr.bf16.mxu0 0
    %1380 = vmatpush1.bf16.msra.mxu0 0
    %1381 = vmatprep.subr.bf16.mxu0 0
    %1382 = vmatpush1.bf16.msra.mxu0 0
    %1383 = vmatprep.subr.bf16.mxu0 0
    %1384 = vmatpush1.bf16.msra.mxu0 0
    %1385 = vmatprep.subr.bf16.mxu0 0
    %1386 = vmatpush1.bf16.msra.mxu0 0
    %1387 = vmatprep.subr.bf16.mxu0 0
    %1388 = vmatpush1.bf16.msra.mxu0 0
    %1389 = vmatprep.subr.bf16.mxu0 0
    %1390 = vmatpush1.bf16.msra.mxu0 0
    %1391 = vmatprep.subr.bf16.mxu0 0
    %1392 = vmatpush1.bf16.msra.mxu0 0
    %1393 = vmatprep.mubr.bf16.mxu0 0
    %1394 = vmatmul.mubr.bf16.gmra.mrb[0].mxu0 %v1356
    %v1395 = vpop.f32.mrb[0].mxu0
    %v1396 = vadd.f32 0.0, %v1395
    %v1397 = vpop.f32.mrb[0].mxu0
    %v1398 = vpop.f32.mrb[0].mxu0
    %v1399 = vpop.f32.mrb[0].mxu0
    %1400 = vdwg.mxu0
    %1401 = vrot.lane.b32.xlu0 %v133, 44
    %v1402 = vpop.permute.xlu0 %1401
    %v1404 = vsel %vm231, %v1352, 0
    %v1407 = vsel %vm257, %v1402, 0
    %1409 = vmatprep.subr.bf16.mxu0 0
    %1410 = vmatpush1.bf16.msra.mxu0 %v1407
    %1411 = vmatprep.subr.bf16.mxu0 0
    %1412 = vmatpush1.bf16.msra.mxu0 0
    %1413 = vmatprep.subr.bf16.mxu0 0
    %1414 = vmatpush1.bf16.msra.mxu0 0
    %1415 = vmatprep.subr.bf16.mxu0 0
    %1416 = vmatpush1.bf16.msra.mxu0 0
    %1417 = vmatprep.subr.bf16.mxu0 0
    %1418 = vmatpush1.bf16.msra.mxu0 0
    %1419 = vmatprep.subr.bf16.mxu0 0
    %1420 = vmatpush1.bf16.msra.mxu0 0
    %1421 = vmatprep.subr.bf16.mxu0 0
    %1422 = vmatpush1.bf16.msra.mxu0 0
    %1423 = vmatprep.subr.bf16.mxu0 0
    %1424 = vmatpush1.bf16.msra.mxu0 0
    %1425 = vmatprep.subr.bf16.mxu0 0
    %1426 = vmatpush1.bf16.msra.mxu0 0
    %1427 = vmatprep.subr.bf16.mxu0 0
    %1428 = vmatpush1.bf16.msra.mxu0 0
    %1429 = vmatprep.subr.bf16.mxu0 0
    %1430 = vmatpush1.bf16.msra.mxu0 0
    %1431 = vmatprep.subr.bf16.mxu0 0
    %1432 = vmatpush1.bf16.msra.mxu0 0
    %1433 = vmatprep.subr.bf16.mxu0 0
    %1434 = vmatpush1.bf16.msra.mxu0 0
    %1435 = vmatprep.subr.bf16.mxu0 0
    %1436 = vmatpush1.bf16.msra.mxu0 0
    %1437 = vmatprep.subr.bf16.mxu0 0
    %1438 = vmatpush1.bf16.msra.mxu0 0
    %1439 = vmatprep.subr.bf16.mxu0 0
    %1440 = vmatpush1.bf16.msra.mxu0 0
    %1441 = vmatprep.mubr.bf16.mxu0 0
    %1442 = vmatmul.mubr.bf16.gmra.mrb[0].mxu0 %v1404
    %v1443 = vpop.f32.mrb[0].mxu0
    %v1444 = vadd.f32 0.0, %v1443
    %v1445 = vpop.f32.mrb[0].mxu0
    %v1446 = vpop.f32.mrb[0].mxu0
    %v1447 = vpop.f32.mrb[0].mxu0
    %1448 = vdwg.mxu0
    %v1449 = vrcp.pop %v1347
    %v1450 = vrcp.pop %v1350
    %v1451 = vmul.f32 %v1396, %v1449
    %v1452 = vmul.f32 %v1444, %v1450
    %1453 = vrot.lane.b32.xlu0 %v132, 104
    %v1454 = vpop.permute.xlu0 %1453
    %1455 = vrot.lane.b32.xlu0 %v132, 72
    %v1456 = vpop.permute.xlu0 %1455
    %v1458 = vsel %vm136, %v1454, 0
    %v1461 = vsel %vm136, %v1456, 0
    %1463 = vmatprep.subr.bf16.mxu0 0
    %1464 = vmatpush1.bf16.xpose.msra.mxu0 %v1461
    %1465 = vmatprep.subr.bf16.mxu0 0
    %1466 = vmatpush1.bf16.xpose.msra.mxu0 0
    %1467 = vmatprep.subr.bf16.mxu0 0
    %1468 = vmatpush1.bf16.xpose.msra.mxu0 0
    %1469 = vmatprep.subr.bf16.mxu0 0
    %1470 = vmatpush1.bf16.xpose.msra.mxu0 0
    %1471 = vmatprep.subr.bf16.mxu0 0
    %1472 = vmatpush1.bf16.xpose.msra.mxu0 0
    %1473 = vmatprep.subr.bf16.mxu0 0
    %1474 = vmatpush1.bf16.xpose.msra.mxu0 0
    %1475 = vmatprep.subr.bf16.mxu0 0
    %1476 = vmatpush1.bf16.xpose.msra.mxu0 0
    %1477 = vmatprep.subr.bf16.mxu0 0
    %1478 = vmatpush1.bf16.xpose.msra.mxu0 0
    %1479 = vmatprep.subr.bf16.mxu0 0
    %1480 = vmatpush1.bf16.xpose.msra.mxu0 0
    %1481 = vmatprep.subr.bf16.mxu0 0
    %1482 = vmatpush1.bf16.xpose.msra.mxu0 0
    %1483 = vmatprep.subr.bf16.mxu0 0
    %1484 = vmatpush1.bf16.xpose.msra.mxu0 0
    %1485 = vmatprep.subr.bf16.mxu0 0
    %1486 = vmatpush1.bf16.xpose.msra.mxu0 0
    %1487 = vmatprep.subr.bf16.mxu0 0
    %1488 = vmatpush1.bf16.xpose.msra.mxu0 0
    %1489 = vmatprep.subr.bf16.mxu0 0
    %1490 = vmatpush1.bf16.xpose.msra.mxu0 0
    %1491 = vmatprep.subr.bf16.mxu0 0
    %1492 = vmatpush1.bf16.xpose.msra.mxu0 0
    %1493 = vmatprep.subr.bf16.mxu0 0
    %1494 = vmatpush1.bf16.xpose.msra.mxu0 0
    %1495 = vmatprep.mubr.bf16.mxu0 0
    %1496 = vmatmul.mubr.bf16.gmra.mrb[0].mxu0 %v1458
    %v1497 = vpop.f32.mrb[0].mxu0
    %v1498 = vadd.f32 0.0, %v1497
    %v1499 = vpop.f32.mrb[0].mxu0
    %v1500 = vpop.f32.mrb[0].mxu0
    %v1501 = vpop.f32.mrb[0].mxu0
    %1502 = vdwg.mxu0
    %1503 = vrot.lane.b32.xlu0 %v133, 104
    %v1504 = vpop.permute.xlu0 %1503
    %1505 = vrot.lane.b32.xlu0 %v133, 72
    %v1506 = vpop.permute.xlu0 %1505
    %v1508 = vsel %vm136, %v1504, 0
    %v1511 = vsel %vm136, %v1506, 0
    %1513 = vmatprep.subr.bf16.mxu0 0
    %1514 = vmatpush1.bf16.xpose.msra.mxu0 %v1511
    %1515 = vmatprep.subr.bf16.mxu0 0
    %1516 = vmatpush1.bf16.xpose.msra.mxu0 0
    %1517 = vmatprep.subr.bf16.mxu0 0
    %1518 = vmatpush1.bf16.xpose.msra.mxu0 0
    %1519 = vmatprep.subr.bf16.mxu0 0
    %1520 = vmatpush1.bf16.xpose.msra.mxu0 0
    %1521 = vmatprep.subr.bf16.mxu0 0
    %1522 = vmatpush1.bf16.xpose.msra.mxu0 0
    %1523 = vmatprep.subr.bf16.mxu0 0
    %1524 = vmatpush1.bf16.xpose.msra.mxu0 0
    %1525 = vmatprep.subr.bf16.mxu0 0
    %1526 = vmatpush1.bf16.xpose.msra.mxu0 0
    %1527 = vmatprep.subr.bf16.mxu0 0
    %1528 = vmatpush1.bf16.xpose.msra.mxu0 0
    %1529 = vmatprep.subr.bf16.mxu0 0
    %1530 = vmatpush1.bf16.xpose.msra.mxu0 0
    %1531 = vmatprep.subr.bf16.mxu0 0
    %1532 = vmatpush1.bf16.xpose.msra.mxu0 0
    %1533 = vmatprep.subr.bf16.mxu0 0
    %1534 = vmatpush1.bf16.xpose.msra.mxu0 0
    %1535 = vmatprep.subr.bf16.mxu0 0
    %1536 = vmatpush1.bf16.xpose.msra.mxu0 0
    %1537 = vmatprep.subr.bf16.mxu0 0
    %1538 = vmatpush1.bf16.xpose.msra.mxu0 0
    %1539 = vmatprep.subr.bf16.mxu0 0
    %1540 = vmatpush1.bf16.xpose.msra.mxu0 0
    %1541 = vmatprep.subr.bf16.mxu0 0
    %1542 = vmatpush1.bf16.xpose.msra.mxu0 0
    %1543 = vmatprep.subr.bf16.mxu0 0
    %1544 = vmatpush1.bf16.xpose.msra.mxu0 0
    %1545 = vmatprep.mubr.bf16.mxu0 0
    %1546 = vmatmul.mubr.bf16.gmra.mrb[0].mxu0 %v1508
    %v1547 = vpop.f32.mrb[0].mxu0
    %v1548 = vadd.f32 0.0, %v1547
    %v1549 = vpop.f32.mrb[0].mxu0
    %v1550 = vpop.f32.mrb[0].mxu0
    %v1551 = vpop.f32.mrb[0].mxu0
    %1552 = vdwg.mxu0
    %v1553 = vsel %vm231, %v1498, -inf
    %1554 = vmax.xlane.f32.xlu0 %v1553
    %v1555 = vpop.xlane.xlu0 %1554
    %v1556 = vsel %vm231, %v1548, -inf
    %1557 = vmax.xlane.f32.xlu0 %v1556
    %v1558 = vpop.xlane.xlu0 %1557
    %v1559 = vsub.f32 %v1498, %v1555
    %v1560 = vsub.f32 %v1548, %v1558
    %v1561 = vmul.f32 %v1559, 1.442695
    %v1562 = vpow.pop %v1561
    %v1563 = vmul.f32 %v1560, 1.442695
    %v1564 = vpow.pop %v1563
    %v1565 = vsel %vm231, %v1562, 0.0
    %1566 = vadd.xlane.f32.xlu0 %v1565
    %v1567 = vpop.xlane.xlu0 %1566
    %v1568 = vsel %vm231, %v1564, 0.0
    %1569 = vadd.xlane.f32.xlu0 %v1568
    %v1570 = vpop.xlane.xlu0 %1569
    %v1571 = vpack.c.bf16 %v1562, %v1562
    %v1572 = vpack.c.bf16 %v1564, %v1564
    %1573 = vrot.lane.b32.xlu0 %v132, 40
    %v1574 = vpop.permute.xlu0 %1573
    %v1576 = vsel %vm231, %v1571, 0
    %v1579 = vsel %vm257, %v1574, 0
    %1581 = vmatprep.subr.bf16.mxu0 0
    %1582 = vmatpush1.bf16.msra.mxu0 %v1579
    %1583 = vmatprep.subr.bf16.mxu0 0
    %1584 = vmatpush1.bf16.msra.mxu0 0
    %1585 = vmatprep.subr.bf16.mxu0 0
    %1586 = vmatpush1.bf16.msra.mxu0 0
    %1587 = vmatprep.subr.bf16.mxu0 0
    %1588 = vmatpush1.bf16.msra.mxu0 0
    %1589 = vmatprep.subr.bf16.mxu0 0
    %1590 = vmatpush1.bf16.msra.mxu0 0
    %1591 = vmatprep.subr.bf16.mxu0 0
    %1592 = vmatpush1.bf16.msra.mxu0 0
    %1593 = vmatprep.subr.bf16.mxu0 0
    %1594 = vmatpush1.bf16.msra.mxu0 0
    %1595 = vmatprep.subr.bf16.mxu0 0
    %1596 = vmatpush1.bf16.msra.mxu0 0
    %1597 = vmatprep.subr.bf16.mxu0 0
    %1598 = vmatpush1.bf16.msra.mxu0 0
    %1599 = vmatprep.subr.bf16.mxu0 0
    %1600 = vmatpush1.bf16.msra.mxu0 0
    %1601 = vmatprep.subr.bf16.mxu0 0
    %1602 = vmatpush1.bf16.msra.mxu0 0
    %1603 = vmatprep.subr.bf16.mxu0 0
    %1604 = vmatpush1.bf16.msra.mxu0 0
    %1605 = vmatprep.subr.bf16.mxu0 0
    %1606 = vmatpush1.bf16.msra.mxu0 0
    %1607 = vmatprep.subr.bf16.mxu0 0
    %1608 = vmatpush1.bf16.msra.mxu0 0
    %1609 = vmatprep.subr.bf16.mxu0 0
    %1610 = vmatpush1.bf16.msra.mxu0 0
    %1611 = vmatprep.subr.bf16.mxu0 0
    %1612 = vmatpush1.bf16.msra.mxu0 0
    %1613 = vmatprep.mubr.bf16.mxu0 0
    %1614 = vmatmul.mubr.bf16.gmra.mrb[0].mxu0 %v1576
    %v1615 = vpop.f32.mrb[0].mxu0
    %v1616 = vadd.f32 0.0, %v1615
    %v1617 = vpop.f32.mrb[0].mxu0
    %v1618 = vpop.f32.mrb[0].mxu0
    %v1619 = vpop.f32.mrb[0].mxu0
    %1620 = vdwg.mxu0
    %1621 = vrot.lane.b32.xlu0 %v133, 40
    %v1622 = vpop.permute.xlu0 %1621
    %v1624 = vsel %vm231, %v1572, 0
    %v1627 = vsel %vm257, %v1622, 0
    %1629 = vmatprep.subr.bf16.mxu0 0
    %1630 = vmatpush1.bf16.msra.mxu0 %v1627
    %1631 = vmatprep.subr.bf16.mxu0 0
    %1632 = vmatpush1.bf16.msra.mxu0 0
    %1633 = vmatprep.subr.bf16.mxu0 0
    %1634 = vmatpush1.bf16.msra.mxu0 0
    %1635 = vmatprep.subr.bf16.mxu0 0
    %1636 = vmatpush1.bf16.msra.mxu0 0
    %1637 = vmatprep.subr.bf16.mxu0 0
    %1638 = vmatpush1.bf16.msra.mxu0 0
    %1639 = vmatprep.subr.bf16.mxu0 0
    %1640 = vmatpush1.bf16.msra.mxu0 0
    %1641 = vmatprep.subr.bf16.mxu0 0
    %1642 = vmatpush1.bf16.msra.mxu0 0
    %1643 = vmatprep.subr.bf16.mxu0 0
    %1644 = vmatpush1.bf16.msra.mxu0 0
    %1645 = vmatprep.subr.bf16.mxu0 0
    %1646 = vmatpush1.bf16.msra.mxu0 0
    %1647 = vmatprep.subr.bf16.mxu0 0
    %1648 = vmatpush1.bf16.msra.mxu0 0
    %1649 = vmatprep.subr.bf16.mxu0 0
    %1650 = vmatpush1.bf16.msra.mxu0 0
    %1651 = vmatprep.subr.bf16.mxu0 0
    %1652 = vmatpush1.bf16.msra.mxu0 0
    %1653 = vmatprep.subr.bf16.mxu0 0
    %1654 = vmatpush1.bf16.msra.mxu0 0
    %1655 = vmatprep.subr.bf16.mxu0 0
    %1656 = vmatpush1.bf16.msra.mxu0 0
    %1657 = vmatprep.subr.bf16.mxu0 0
    %1658 = vmatpush1.bf16.msra.mxu0 0
    %1659 = vmatprep.subr.bf16.mxu0 0
    %1660 = vmatpush1.bf16.msra.mxu0 0
    %1661 = vmatprep.mubr.bf16.mxu0 0
    %1662 = vmatmul.mubr.bf16.gmra.mrb[0].mxu0 %v1624
    %v1663 = vpop.f32.mrb[0].mxu0
    %v1664 = vadd.f32 0.0, %v1663
    %v1665 = vpop.f32.mrb[0].mxu0
    %v1666 = vpop.f32.mrb[0].mxu0
    %v1667 = vpop.f32.mrb[0].mxu0
    %1668 = vdwg.mxu0
    %v1669 = vrcp.pop %v1567
    %v1670 = vrcp.pop %v1570
    %v1671 = vmul.f32 %v1616, %v1669
    %v1672 = vmul.f32 %v1664, %v1670
    %1673 = vrot.lane.b32.xlu0 %v132, 100
    %v1674 = vpop.permute.xlu0 %1673
    %1675 = vrot.lane.b32.xlu0 %v132, 68
    %v1676 = vpop.permute.xlu0 %1675
    %v1678 = vsel %vm136, %v1674, 0
    %v1681 = vsel %vm136, %v1676, 0
    %1683 = vmatprep.subr.bf16.mxu0 0
    %1684 = vmatpush1.bf16.xpose.msra.mxu0 %v1681
    %1685 = vmatprep.subr.bf16.mxu0 0
    %1686 = vmatpush1.bf16.xpose.msra.mxu0 0
    %1687 = vmatprep.subr.bf16.mxu0 0
    %1688 = vmatpush1.bf16.xpose.msra.mxu0 0
    %1689 = vmatprep.subr.bf16.mxu0 0
    %1690 = vmatpush1.bf16.xpose.msra.mxu0 0
    %1691 = vmatprep.subr.bf16.mxu0 0
    %1692 = vmatpush1.bf16.xpose.msra.mxu0 0
    %1693 = vmatprep.subr.bf16.mxu0 0
    %1694 = vmatpush1.bf16.xpose.msra.mxu0 0
    %1695 = vmatprep.subr.bf16.mxu0 0
    %1696 = vmatpush1.bf16.xpose.msra.mxu0 0
    %1697 = vmatprep.subr.bf16.mxu0 0
    %1698 = vmatpush1.bf16.xpose.msra.mxu0 0
    %1699 = vmatprep.subr.bf16.mxu0 0
    %1700 = vmatpush1.bf16.xpose.msra.mxu0 0
    %1701 = vmatprep.subr.bf16.mxu0 0
    %1702 = vmatpush1.bf16.xpose.msra.mxu0 0
    %1703 = vmatprep.subr.bf16.mxu0 0
    %1704 = vmatpush1.bf16.xpose.msra.mxu0 0
    %1705 = vmatprep.subr.bf16.mxu0 0
    %1706 = vmatpush1.bf16.xpose.msra.mxu0 0
    %1707 = vmatprep.subr.bf16.mxu0 0
    %1708 = vmatpush1.bf16.xpose.msra.mxu0 0
    %1709 = vmatprep.subr.bf16.mxu0 0
    %1710 = vmatpush1.bf16.xpose.msra.mxu0 0
    %1711 = vmatprep.subr.bf16.mxu0 0
    %1712 = vmatpush1.bf16.xpose.msra.mxu0 0
    %1713 = vmatprep.subr.bf16.mxu0 0
    %1714 = vmatpush1.bf16.xpose.msra.mxu0 0
    %1715 = vmatprep.mubr.bf16.mxu0 0
    %1716 = vmatmul.mubr.bf16.gmra.mrb[0].mxu0 %v1678
    %v1717 = vpop.f32.mrb[0].mxu0
    %v1718 = vadd.f32 0.0, %v1717
    %v1719 = vpop.f32.mrb[0].mxu0
    %v1720 = vpop.f32.mrb[0].mxu0
    %v1721 = vpop.f32.mrb[0].mxu0
    %1722 = vdwg.mxu0
    %1723 = vrot.lane.b32.xlu0 %v133, 100
    %v1724 = vpop.permute.xlu0 %1723
    %1725 = vrot.lane.b32.xlu0 %v133, 68
    %v1726 = vpop.permute.xlu0 %1725
    %v1728 = vsel %vm136, %v1724, 0
    %v1731 = vsel %vm136, %v1726, 0
    %1733 = vmatprep.subr.bf16.mxu0 0
    %1734 = vmatpush1.bf16.xpose.msra.mxu0 %v1731
    %1735 = vmatprep.subr.bf16.mxu0 0
    %1736 = vmatpush1.bf16.xpose.msra.mxu0 0
    %1737 = vmatprep.subr.bf16.mxu0 0
    %1738 = vmatpush1.bf16.xpose.msra.mxu0 0
    %1739 = vmatprep.subr.bf16.mxu0 0
    %1740 = vmatpush1.bf16.xpose.msra.mxu0 0
    %1741 = vmatprep.subr.bf16.mxu0 0
    %1742 = vmatpush1.bf16.xpose.msra.mxu0 0
    %1743 = vmatprep.subr.bf16.mxu0 0
    %1744 = vmatpush1.bf16.xpose.msra.mxu0 0
    %1745 = vmatprep.subr.bf16.mxu0 0
    %1746 = vmatpush1.bf16.xpose.msra.mxu0 0
    %1747 = vmatprep.subr.bf16.mxu0 0
    %1748 = vmatpush1.bf16.xpose.msra.mxu0 0
    %1749 = vmatprep.subr.bf16.mxu0 0
    %1750 = vmatpush1.bf16.xpose.msra.mxu0 0
    %1751 = vmatprep.subr.bf16.mxu0 0
    %1752 = vmatpush1.bf16.xpose.msra.mxu0 0
    %1753 = vmatprep.subr.bf16.mxu0 0
    %1754 = vmatpush1.bf16.xpose.msra.mxu0 0
    %1755 = vmatprep.subr.bf16.mxu0 0
    %1756 = vmatpush1.bf16.xpose.msra.mxu0 0
    %1757 = vmatprep.subr.bf16.mxu0 0
    %1758 = vmatpush1.bf16.xpose.msra.mxu0 0
    %1759 = vmatprep.subr.bf16.mxu0 0
    %1760 = vmatpush1.bf16.xpose.msra.mxu0 0
    %1761 = vmatprep.subr.bf16.mxu0 0
    %1762 = vmatpush1.bf16.xpose.msra.mxu0 0
    %1763 = vmatprep.subr.bf16.mxu0 0
    %1764 = vmatpush1.bf16.xpose.msra.mxu0 0
    %1765 = vmatprep.mubr.bf16.mxu0 0
    %1766 = vmatmul.mubr.bf16.gmra.mrb[0].mxu0 %v1728
    %v1767 = vpop.f32.mrb[0].mxu0
    %v1768 = vadd.f32 0.0, %v1767
    %v1769 = vpop.f32.mrb[0].mxu0
    %v1770 = vpop.f32.mrb[0].mxu0
    %v1771 = vpop.f32.mrb[0].mxu0
    %1772 = vdwg.mxu0
    %v1773 = vsel %vm231, %v1718, -inf
    %1774 = vmax.xlane.f32.xlu0 %v1773
    %v1775 = vpop.xlane.xlu0 %1774
    %v1776 = vsel %vm231, %v1768, -inf
    %1777 = vmax.xlane.f32.xlu0 %v1776
    %v1778 = vpop.xlane.xlu0 %1777
    %v1779 = vsub.f32 %v1718, %v1775
    %v1780 = vsub.f32 %v1768, %v1778
    %v1781 = vmul.f32 %v1779, 1.442695
    %v1782 = vpow.pop %v1781
    %v1783 = vmul.f32 %v1780, 1.442695
    %v1784 = vpow.pop %v1783
    %v1785 = vsel %vm231, %v1782, 0.0
    %1786 = vadd.xlane.f32.xlu0 %v1785
    %v1787 = vpop.xlane.xlu0 %1786
    %v1788 = vsel %vm231, %v1784, 0.0
    %1789 = vadd.xlane.f32.xlu0 %v1788
    %v1790 = vpop.xlane.xlu0 %1789
    %v1791 = vpack.c.bf16 %v1782, %v1782
    %v1792 = vpack.c.bf16 %v1784, %v1784
    %1793 = vrot.lane.b32.xlu0 %v132, 36
    %v1794 = vpop.permute.xlu0 %1793
    %v1796 = vsel %vm231, %v1791, 0
    %v1799 = vsel %vm257, %v1794, 0
    %1801 = vmatprep.subr.bf16.mxu0 0
    %1802 = vmatpush1.bf16.msra.mxu0 %v1799
    %1803 = vmatprep.subr.bf16.mxu0 0
    %1804 = vmatpush1.bf16.msra.mxu0 0
    %1805 = vmatprep.subr.bf16.mxu0 0
    %1806 = vmatpush1.bf16.msra.mxu0 0
    %1807 = vmatprep.subr.bf16.mxu0 0
    %1808 = vmatpush1.bf16.msra.mxu0 0
    %1809 = vmatprep.subr.bf16.mxu0 0
    %1810 = vmatpush1.bf16.msra.mxu0 0
    %1811 = vmatprep.subr.bf16.mxu0 0
    %1812 = vmatpush1.bf16.msra.mxu0 0
    %1813 = vmatprep.subr.bf16.mxu0 0
    %1814 = vmatpush1.bf16.msra.mxu0 0
    %1815 = vmatprep.subr.bf16.mxu0 0
    %1816 = vmatpush1.bf16.msra.mxu0 0
    %1817 = vmatprep.subr.bf16.mxu0 0
    %1818 = vmatpush1.bf16.msra.mxu0 0
    %1819 = vmatprep.subr.bf16.mxu0 0
    %1820 = vmatpush1.bf16.msra.mxu0 0
    %1821 = vmatprep.subr.bf16.mxu0 0
    %1822 = vmatpush1.bf16.msra.mxu0 0
    %1823 = vmatprep.subr.bf16.mxu0 0
    %1824 = vmatpush1.bf16.msra.mxu0 0
    %1825 = vmatprep.subr.bf16.mxu0 0
    %1826 = vmatpush1.bf16.msra.mxu0 0
    %1827 = vmatprep.subr.bf16.mxu0 0
    %1828 = vmatpush1.bf16.msra.mxu0 0
    %1829 = vmatprep.subr.bf16.mxu0 0
    %1830 = vmatpush1.bf16.msra.mxu0 0
    %1831 = vmatprep.subr.bf16.mxu0 0
    %1832 = vmatpush1.bf16.msra.mxu0 0
    %1833 = vmatprep.mubr.bf16.mxu0 0
    %1834 = vmatmul.mubr.bf16.gmra.mrb[0].mxu0 %v1796
    %v1835 = vpop.f32.mrb[0].mxu0
    %v1836 = vadd.f32 0.0, %v1835
    %v1837 = vpop.f32.mrb[0].mxu0
    %v1838 = vpop.f32.mrb[0].mxu0
    %v1839 = vpop.f32.mrb[0].mxu0
    %1840 = vdwg.mxu0
    %1841 = vrot.lane.b32.xlu0 %v133, 36
    %v1842 = vpop.permute.xlu0 %1841
    %v1844 = vsel %vm231, %v1792, 0
    %v1847 = vsel %vm257, %v1842, 0
    %1849 = vmatprep.subr.bf16.mxu0 0
    %1850 = vmatpush1.bf16.msra.mxu0 %v1847
    %1851 = vmatprep.subr.bf16.mxu0 0
    %1852 = vmatpush1.bf16.msra.mxu0 0
    %1853 = vmatprep.subr.bf16.mxu0 0
    %1854 = vmatpush1.bf16.msra.mxu0 0
    %1855 = vmatprep.subr.bf16.mxu0 0
    %1856 = vmatpush1.bf16.msra.mxu0 0
    %1857 = vmatprep.subr.bf16.mxu0 0
    %1858 = vmatpush1.bf16.msra.mxu0 0
    %1859 = vmatprep.subr.bf16.mxu0 0
    %1860 = vmatpush1.bf16.msra.mxu0 0
    %1861 = vmatprep.subr.bf16.mxu0 0
    %1862 = vmatpush1.bf16.msra.mxu0 0
    %1863 = vmatprep.subr.bf16.mxu0 0
    %1864 = vmatpush1.bf16.msra.mxu0 0
    %1865 = vmatprep.subr.bf16.mxu0 0
    %1866 = vmatpush1.bf16.msra.mxu0 0
    %1867 = vmatprep.subr.bf16.mxu0 0
    %1868 = vmatpush1.bf16.msra.mxu0 0
    %1869 = vmatprep.subr.bf16.mxu0 0
    %1870 = vmatpush1.bf16.msra.mxu0 0
    %1871 = vmatprep.subr.bf16.mxu0 0
    %1872 = vmatpush1.bf16.msra.mxu0 0
    %1873 = vmatprep.subr.bf16.mxu0 0
    %1874 = vmatpush1.bf16.msra.mxu0 0
    %1875 = vmatprep.subr.bf16.mxu0 0
    %1876 = vmatpush1.bf16.msra.mxu0 0
    %1877 = vmatprep.subr.bf16.mxu0 0
    %1878 = vmatpush1.bf16.msra.mxu0 0
    %1879 = vmatprep.subr.bf16.mxu0 0
    %1880 = vmatpush1.bf16.msra.mxu0 0
    %1881 = vmatprep.mubr.bf16.mxu0 0
    %1882 = vmatmul.mubr.bf16.gmra.mrb[0].mxu0 %v1844
    %v1883 = vpop.f32.mrb[0].mxu0
    %v1884 = vadd.f32 0.0, %v1883
    %v1885 = vpop.f32.mrb[0].mxu0
    %v1886 = vpop.f32.mrb[0].mxu0
    %v1887 = vpop.f32.mrb[0].mxu0
    %1888 = vdwg.mxu0
    %v1889 = vrcp.pop %v1787
    %v1890 = vrcp.pop %v1790
    %v1891 = vmul.f32 %v1836, %v1889
    %v1892 = vmul.f32 %v1884, %v1890
    %1895 = vrot.lane.b32.xlu0 %v571, 4
    %v1896 = vpop.permute.xlu0 %1895
    %1897 = vrot.lane.b32.xlu0 %v572, 4
    %v1898 = vpop.permute.xlu0 %1897
    %1903 = vrot.lane.b32.xlu0 %v791, 8
    %v1904 = vpop.permute.xlu0 %1903
    %1905 = vrot.lane.b32.xlu0 %v792, 8
    %v1906 = vpop.permute.xlu0 %1905
    %1911 = vrot.lane.b32.xlu0 %v1011, 12
    %v1912 = vpop.permute.xlu0 %1911
    %1913 = vrot.lane.b32.xlu0 %v1012, 12
    %v1914 = vpop.permute.xlu0 %1913
    %1919 = vrot.lane.b32.xlu0 %v1231, 16
    %v1920 = vpop.permute.xlu0 %1919
    %1921 = vrot.lane.b32.xlu0 %v1232, 16
    %v1922 = vpop.permute.xlu0 %1921
    %1927 = vrot.lane.b32.xlu0 %v1451, 20
    %v1928 = vpop.permute.xlu0 %1927
    %1929 = vrot.lane.b32.xlu0 %v1452, 20
    %v1930 = vpop.permute.xlu0 %1929
    %1935 = vrot.lane.b32.xlu0 %v1671, 24
    %v1936 = vpop.permute.xlu0 %1935
    %1937 = vrot.lane.b32.xlu0 %v1672, 24
    %v1938 = vpop.permute.xlu0 %1937
    %1943 = vrot.lane.b32.xlu0 %v1891, 28
    %v1944 = vpop.permute.xlu0 %1943
    %1945 = vrot.lane.b32.xlu0 %v1892, 28
    %v1946 = vpop.permute.xlu0 %1945
    %v1949 = vsel %vm136, %v351, %v1896
    %v1950 = vsel %vm136, %v352, %v1898
    %v1951 = vsel %vm231, %v1949, %v1904
    %v1952 = vsel %vm231, %v1950, %v1906
    %vm1953 = vcmask 97280
    %v1954 = vsel %vm1953, %v1951, %v1912
    %v1955 = vsel %vm1953, %v1952, %v1914
    %vm1956 = vcmask 130048
    %v1957 = vsel %vm1956, %v1954, %v1920
    %v1958 = vsel %vm1956, %v1955, %v1922
    %vm1959 = vcmask 162816
    %v1960 = vsel %vm1959, %v1957, %v1928
    %v1961 = vsel %vm1959, %v1958, %v1930
    %vm1962 = vcmask 195584
    %v1963 = vsel %vm1962, %v1960, %v1936
    %v1964 = vsel %vm1962, %v1961, %v1938
    %vm1965 = vcmask 228352
    %v1966 = vsel %vm1965, %v1963, %v1944
    %v1967 = vsel %vm1965, %v1964, %v1946
    %v1968 = vpack.c.bf16 %v1966, %v1966
    %v1969 = vpack.c.bf16 %v1967, %v1967
    %v1970 = vld [vmem:[#allocation7] sm:$0xf]
    %v1971 = vld [vmem:[#allocation7 + $0x4] sm:$0xf]
    %v1972 = vld [vmem:[#allocation7 + $0x8] sm:$0xf]
    %v1973 = vld [vmem:[#allocation7 + $0xc] sm:$0xf]
    %v1974 = vld [vmem:[%s3] sm:$0x1]
    %v1976 = vlaneseq
    %v1977 = vshrl.u32 %v1976, 7
    %v1978 = vsub.s32 0, %v1977
    %v1979 = vrot.slane %v1974, %v1978
    %v1983 = vunpack.c.l.b16 %v1968
    %v1984 = vunpack.c.l.b16 %v1969
    %v1985 = vpack.c.b16 %v1984, %v1983
    %v1990 = vunpack.c.l.b16 %v1970
    %v1991 = vunpack.c.l.b16 %v1971
    %v1992 = vunpack.c.l.b16 %v1972
    %v1993 = vunpack.c.l.b16 %v1973
    %v1994 = vpack.c.b16 %v1991, %v1990
    %v1995 = vpack.c.b16 %v1993, %v1992
    %v1999 = vsel %vm83, %v1985, 0
    %2001 = vmatprep.subr.bf16.mxu0 0
    %2002 = vmatpush1.bf16.msra.mxu0 %v1994
    %2003 = vmatprep.subr.bf16.mxu0 0
    %2004 = vmatpush1.bf16.msra.mxu0 %v1995
    %2005 = vmatprep.subr.bf16.mxu0 0
    %2006 = vmatpush1.bf16.msra.mxu0 0
    %2007 = vmatprep.subr.bf16.mxu0 0
    %2008 = vmatpush1.bf16.msra.mxu0 0
    %2009 = vmatprep.subr.bf16.mxu0 0
    %2010 = vmatpush1.bf16.msra.mxu0 0
    %2011 = vmatprep.subr.bf16.mxu0 0
    %2012 = vmatpush1.bf16.msra.mxu0 0
    %2013 = vmatprep.subr.bf16.mxu0 0
    %2014 = vmatpush1.bf16.msra.mxu0 0
    %2015 = vmatprep.subr.bf16.mxu0 0
    %2016 = vmatpush1.bf16.msra.mxu0 0
    %2017 = vmatprep.subr.bf16.mxu0 0
    %2018 = vmatpush1.bf16.msra.mxu0 0
    %2019 = vmatprep.subr.bf16.mxu0 0
    %2020 = vmatpush1.bf16.msra.mxu0 0
    %2021 = vmatprep.subr.bf16.mxu0 0
    %2022 = vmatpush1.bf16.msra.mxu0 0
    %2023 = vmatprep.subr.bf16.mxu0 0
    %2024 = vmatpush1.bf16.msra.mxu0 0
    %2025 = vmatprep.subr.bf16.mxu0 0
    %2026 = vmatpush1.bf16.msra.mxu0 0
    %2027 = vmatprep.subr.bf16.mxu0 0
    %2028 = vmatpush1.bf16.msra.mxu0 0
    %2029 = vmatprep.subr.bf16.mxu0 0
    %2030 = vmatpush1.bf16.msra.mxu0 0
    %2031 = vmatprep.subr.bf16.mxu0 0
    %2032 = vmatpush1.bf16.msra.mxu0 0
    %2033 = vmatprep.mubr.bf16.mxu0 0
    %2034 = vmatmul.mubr.bf16.gmra.mrb[0].mxu0 %v1999
    %v2035 = vpop.f32.mrb[0].mxu0
    %v2036 = vadd.f32 %v1979, %v2035
    %v2037 = vpop.f32.mrb[0].mxu0
    %v2038 = vpop.f32.mrb[0].mxu0
    %v2039 = vadd.f32 %v1979, %v2038
    %v2040 = vpop.f32.mrb[0].mxu0
    %2041 = vdwg.mxu0
    %2042 = vst.msk [vmem:[#allocation8] sm:$0xff] %vm83, %v2036
    %2043 = vst.msk [vmem:[#allocation8 + $0x8] sm:$0xff] %vm83, %v2039
    // Predicated region
    $region30: #{tpu_custom_call.1} parent=1 // pred_check
      _
    $region31: #{tpu_custom_call.1} parent=1 // pred_check_branch
      %2045 = sbr.rel (0) target = $region33
    $region32: #{tpu_custom_call.1} parent=1 // pred_region
      %s2047 = ssub.s32 256, 256
      %2048 = vsyncadd [#allocation4], %s2047
      %s2049 = sshll.u32 [#allocation8], 4
      %s2050 = int_to_ptr.vmem [resolvable:$true] %s2049
      %2055 = dma.vmem_to_hbm [thread:$0]  %s2050, 256, %s4, [#allocation4], 128, 128, 8
    $region33: #{tpu_custom_call.1} parent=1 // pred_fallthru
      _
    // Predicated region
    $region34: #{tpu_custom_call.1} parent=1 // pred_check
      _
    $region35: #{tpu_custom_call.1} parent=1 // pred_check_branch
      %2057 = sbr.rel (0) target = $region37
    $region36: #{tpu_custom_call.1} parent=1 // pred_region
      %2058 = dma.done [#allocation4], 256
    $region37: #{tpu_custom_call.1} parent=1 // pred_fallthru
      _
    %2059 = vsyncpa [#allocation3], 1
    %2060 = vsyncpa [#allocation6], 1
    %2061 = vsyncpa [#allocation4], 1

</llo_original>
